<compile_context>
chip_gen: v7x
topology: tpu7x:2x2x1
jax: 0.10.0
libtpu: 0.0.40
codegen_flags: <defaults>
</compile_context>

<pallas_src>
import functools

import numpy as np

import jax
import jax.numpy as jnp
from jax.experimental import pallas as pl
from jax.experimental.pallas import tpu as pltpu


def _shift_lanes(v, off, n):
    """y[..., p] = v[..., (p + off) % n]  (static cyclic shift along lanes)."""
    i = off % n
    if i == 0:
        return v
    return jnp.concatenate([v[:, i:], v[:, :i]], axis=-1)


def convlstm_cell_kernel(x_ref, h_ref, c_ref, w_ref, b_ref, mask_ref,
                         h_out_ref, c_out_ref, im2col_ref,
                         *, H, W, hd, cx, kh, kw):
    # x_ref:     (1, cx, HW)    input channels (zero-padded to cx), flat spatial
    # h_ref:     (1, hd, HW)    hidden state
    # c_ref:     (1, hd, HW)    cell state
    # w_ref:     (4*hd, K)      weights, K = kh*kw*(cx+hd), tap-major columns
    # b_ref:     (4*hd, 1)      bias (lane-broadcast)
    # mask_ref:  (kh*kw, HW)    per-tap validity mask (1.0 inside, 0.0 outside)
    # im2col_ref:(K, HW)        VMEM scratch holding the full im2col matrix
    HW = H * W
    ph, pw = kh // 2, kw // 2
    Ct = cx + hd

    x_val = x_ref[0]                            # (cx, HW)
    h_val = h_ref[0]                            # (hd, HW)

    # Build the im2col matrix: one lane shift + mask per tap, all writes are
    # sublane-aligned (Ct and cx are multiples of 8) and 256-lane dense.
    for t in range(kh * kw):
        di, dj = t // kw, t % kw
        off = (di - ph) * W + (dj - pw)
        m = mask_ref[t:t + 1, :]                # (1, HW), sublane-broadcast
        r0 = t * Ct
        im2col_ref[r0:r0 + cx, :] = _shift_lanes(x_val, off, HW) * m
        im2col_ref[r0 + cx:r0 + Ct, :] = _shift_lanes(h_val, off, HW) * m

    # One MXU matmul for all taps and all gates: (4*hd, K) x (K, HW).
    cc = jnp.dot(w_ref[...], im2col_ref[...],
                 preferred_element_type=jnp.float32)
    cc = cc + b_ref[...].astype(jnp.float32)    # (4*hd, 1) broadcast over lanes

    # Gate split = sublane slices (channels axis); elementwise math runs at
    # full 128-lane width.  Order matches torch.split: i, f, o, g.
    c_cur = c_ref[0].astype(jnp.float32)
    c_next = (jax.nn.sigmoid(cc[1 * hd:2 * hd]) * c_cur
              + jax.nn.sigmoid(cc[0 * hd:1 * hd]) * jnp.tanh(cc[3 * hd:4 * hd]))
    c_out_ref[0] = c_next.astype(c_out_ref.dtype)
    h_next = jax.nn.sigmoid(cc[2 * hd:3 * hd]) * jnp.tanh(c_next)
    h_out_ref[0] = h_next.astype(h_out_ref.dtype)


def convlstm_cell(x_nchw, h_nchw, c_nchw, weight_oihw, bias, kernel_size):
    """Pallas ConvLSTM cell.  Inputs are NCHW / OIHW (PyTorch convention)."""
    kh, kw = kernel_size
    assert kh % 2 == 1 and kw % 2 == 1, "same-padding assumes odd kernel size"
    ph, pw = kh // 2, kw // 2
    B, cin, H, W = x_nchw.shape
    hd = h_nchw.shape[1]
    HW = H * W

    # Pad the (tiny) input-channel axis so every im2col tap block starts on a
    # sublane boundary; h/c are untouched.
    cx = -(-cin // 8) * 8
    Ct = cx + hd
    K = kh * kw * Ct

    # NCHW -> (B, channels, H*W): pure reshapes (no transpose / concat / pad
    # of the big h/c tensors).
    x = x_nchw.reshape(B, cin, HW)
    if cx != cin:
        x = jnp.pad(x, ((0, 0), (0, cx - cin), (0, 0)))
    h = h_nchw.reshape(B, hd, HW)
    c = c_nchw.reshape(B, hd, HW)

    # OIHW (4hd, cin+hd, kh, kw) -> (4hd, K) with column order
    # k = (di*kw + dj)*Ct + [x channels (padded to cx) ; h channels].
    w_x = jnp.pad(weight_oihw[:, :cin], ((0, 0), (0, cx - cin), (0, 0), (0, 0)))
    w_h = weight_oihw[:, cin:]
    w_x = jnp.transpose(w_x, (0, 2, 3, 1))               # (4hd, kh, kw, cx)
    w_h = jnp.transpose(w_h, (0, 2, 3, 1))               # (4hd, kh, kw, hd)
    w_mat = jnp.concatenate([w_x, w_h], axis=-1).reshape(4 * hd, K)
    b = bias.reshape(4 * hd, 1)

    # Per-tap validity masks (trace-time constants, 1.0 = source pixel inside).
    rr = np.arange(HW) // W
    col = np.arange(HW) % W
    mask_list = []
    for di in range(kh):
        for dj in range(kw):
            dr, dc = di - ph, dj - pw
            mask_list.append((rr + dr >= 0) & (rr + dr < H) &
                             (col + dc >= 0) & (col + dc < W))
    masks = jnp.asarray(np.stack(mask_list), dtype=x.dtype)      # (kh*kw, HW)

    kernel = functools.partial(convlstm_cell_kernel, H=H, W=W, hd=hd,
                               cx=cx, kh=kh, kw=kw)

    # TODO(synk): for production-size images add a row-block (halo) spatial
    # grid axis and bf16 inputs; at these shapes one batch element per grid
    # step fits comfortably in VMEM.
    h_out, c_out = pl.pallas_call(
        kernel,
        out_shape=(jax.ShapeDtypeStruct((B, hd, HW), x_nchw.dtype),
                   jax.ShapeDtypeStruct((B, hd, HW), x_nchw.dtype)),
        grid_spec=pltpu.PrefetchScalarGridSpec(
            num_scalar_prefetch=0,
            grid=(B,),
            in_specs=[
                pl.BlockSpec((1, cx, HW), lambda bi: (bi, 0, 0)),
                pl.BlockSpec((1, hd, HW), lambda bi: (bi, 0, 0)),
                pl.BlockSpec((1, hd, HW), lambda bi: (bi, 0, 0)),
                pl.BlockSpec((4 * hd, K), lambda bi: (0, 0)),      # resident
                pl.BlockSpec((4 * hd, 1), lambda bi: (0, 0)),      # resident
                pl.BlockSpec((kh * kw, HW), lambda bi: (0, 0)),    # resident
            ],
            out_specs=[
                pl.BlockSpec((1, hd, HW), lambda bi: (bi, 0, 0)),
                pl.BlockSpec((1, hd, HW), lambda bi: (bi, 0, 0)),
            ],
            scratch_shapes=[pltpu.VMEM((K, HW), x_nchw.dtype)],
        ),
        compiler_params=pltpu.CompilerParams(
            dimension_semantics=("parallel",),
            vmem_limit_bytes=32 * 1024 * 1024),
    )(x, h, c, w_mat, b, masks)

    # back to NCHW: pure reshape (channels already leading).
    return h_out.reshape(B, hd, H, W), c_out.reshape(B, hd, H, W)


def convlstm_cell_ref(x_nchw, h_nchw, c_nchw, weight_oihw, bias, kernel_size):
    """Pure-JAX reference matching the PyTorch forward exactly (NCHW)."""
    kh, kw = kernel_size
    ph, pw = kh // 2, kw // 2
    hd = h_nchw.shape[1]
    combined = jnp.concatenate([x_nchw, h_nchw], axis=1)
    cc = jax.lax.conv_general_dilated(
        combined, weight_oihw, window_strides=(1, 1),
        padding=((ph, ph), (pw, pw)),
        dimension_numbers=("NCHW", "OIHW", "NCHW"),
        preferred_element_type=jnp.float32)
    cc = cc + bias[None, :, None, None]
    cc_i, cc_f, cc_o, cc_g = jnp.split(cc, 4, axis=1)
    i = jax.nn.sigmoid(cc_i)
    f = jax.nn.sigmoid(cc_f)
    o = jax.nn.sigmoid(cc_o)
    g = jnp.tanh(cc_g)
    c_next = f * c_nchw + i * g
    h_next = o * jnp.tanh(c_next)
    return h_next, c_next


if __name__ == "__main__":
    # Module config (small, consistent with the PyTorch __init__)
    B = 2
    input_dim = 4
    hidden_dim = 32
    H = W = 16
    kernel_size = (3, 3)
    C = input_dim + hidden_dim

    key = jax.random.PRNGKey(0)
    kx, kh_, kc, kw_, kb = jax.random.split(key, 5)

    x = jax.random.normal(kx, (B, input_dim, H, W), jnp.float32)
    h_cur = jax.random.normal(kh_, (B, hidden_dim, H, W), jnp.float32)
    c_cur = jax.random.normal(kc, (B, hidden_dim, H, W), jnp.float32)

    # Deterministic Conv2d-style init: U(-1/sqrt(fan_in), 1/sqrt(fan_in)).
    # (bias=True in the module; for bias=False pass zeros.)
    fan_in = C * kernel_size[0] * kernel_size[1]
    bound = 1.0 / (fan_in ** 0.5)
    weight = jax.random.uniform(kw_, (4 * hidden_dim, C, *kernel_size),
                                jnp.float32, minval=-bound, maxval=bound)
    bias = jax.random.uniform(kb, (4 * hidden_dim,),
                              jnp.float32, minval=-bound, maxval=bound)

    h_next, c_next = convlstm_cell(x, h_cur, c_cur, weight, bias, kernel_size)
    jax.block_until_ready((h_next, c_next))

    h_ref, c_ref = convlstm_cell_ref(x, h_cur, c_cur, weight, bias, kernel_size)
    assert h_next.shape == (B, hidden_dim, H, W)
    assert c_next.shape == (B, hidden_dim, H, W)
    assert jnp.allclose(h_next, h_ref, atol=2e-3, rtol=2e-3)
    assert jnp.allclose(c_next, c_ref, atol=2e-3, rtol=2e-3)

    print("KERNEL_OK")
</pallas_src>

<mosaic_0001>
module attributes {stable_mosaic.version = 11 : i64} {
  func.func @convlstm_cell_kernel(%arg0: i32, %arg1: memref<1x8x256xf32, #tpu.memory_space<vmem>>, %arg2: memref<1x32x256xf32, #tpu.memory_space<vmem>>, %arg3: memref<1x32x256xf32, #tpu.memory_space<vmem>>, %arg4: memref<128x360xf32, #tpu.memory_space<vmem>>, %arg5: memref<128x1xf32, #tpu.memory_space<vmem>>, %arg6: memref<9x256xf32, #tpu.memory_space<vmem>>, %arg7: memref<1x32x256xf32, #tpu.memory_space<vmem>>, %arg8: memref<1x32x256xf32, #tpu.memory_space<vmem>>, %arg9: memref<360x256xf32, #tpu.memory_space<vmem>>) attributes {dimension_semantics = [#tpu.dimension_semantics<parallel>], iteration_bounds = array<i64: 2>, scalar_prefetch = 0 : i64, scratch_operands = 1 : i64, tpu.core_type = #tpu.core_type<tc>, window_params = [{transform_indices = @transform_0, window_bounds = array<i64: 1, 8, 256>}, {transform_indices = @transform_1, window_bounds = array<i64: 1, 32, 256>}, {transform_indices = @transform_2, window_bounds = array<i64: 1, 32, 256>}, {pipeline_mode = #tpu.pipeline_mode<synchronous>, transform_indices = @transform_3, window_bounds = array<i64: 128, 360>}, {pipeline_mode = #tpu.pipeline_mode<synchronous>, transform_indices = @transform_4, window_bounds = array<i64: 128, 1>}, {pipeline_mode = #tpu.pipeline_mode<synchronous>, transform_indices = @transform_5, window_bounds = array<i64: 9, 256>}, {transform_indices = @transform_6, window_bounds = array<i64: 1, 32, 256>}, {transform_indices = @transform_7, window_bounds = array<i64: 1, 32, 256>}]} {
    %c0 = arith.constant 0 : index
    %c0_0 = arith.constant 0 : index
    %c0_1 = arith.constant 0 : index
    %0 = vector.load %arg1[%c0, %c0_0, %c0_1] : memref<1x8x256xf32, #tpu.memory_space<vmem>>, vector<1x8x256xf32>
    %1 = vector.shape_cast %0 : vector<1x8x256xf32> to vector<8x256xf32>
    %c0_2 = arith.constant 0 : index
    %c0_3 = arith.constant 0 : index
    %c0_4 = arith.constant 0 : index
    %2 = vector.load %arg2[%c0_2, %c0_3, %c0_4] : memref<1x32x256xf32, #tpu.memory_space<vmem>>, vector<1x32x256xf32>
    %3 = vector.shape_cast %2 : vector<1x32x256xf32> to vector<32x256xf32>
    %c0_5 = arith.constant 0 : index
    %c0_6 = arith.constant 0 : index
    %4 = vector.load %arg6[%c0_5, %c0_6] : memref<9x256xf32, #tpu.memory_space<vmem>>, vector<1x256xf32>
    %5 = vector.extract_strided_slice %1 {offsets = [0, 239], sizes = [8, 17], strides = [1, 1]} : vector<8x256xf32> to vector<8x17xf32>
    %6 = vector.extract_strided_slice %1 {offsets = [0, 0], sizes = [8, 239], strides = [1, 1]} : vector<8x256xf32> to vector<8x239xf32>
    %7 = tpu.concatenate %5, %6 in 1 : vector<8x17xf32>, vector<8x239xf32> -> vector<8x256xf32>
    %8 = vector.broadcast %4 : vector<1x256xf32> to vector<8x256xf32>
    %9 = arith.mulf %7, %8 : vector<8x256xf32>
    %c0_7 = arith.constant 0 : index
    %c0_8 = arith.constant 0 : index
    %10 = vector.load %arg9[%c0_7, %c0_8] : memref<360x256xf32, #tpu.memory_space<vmem>>, vector<8x256xf32>
    tpu.vector_store %arg9[%c0_7, %c0_8], %9 {strides = array<i32>} : memref<360x256xf32, #tpu.memory_space<vmem>>, vector<8x256xf32>,
    %11 = vector.extract_strided_slice %3 {offsets = [0, 239], sizes = [32, 17], strides = [1, 1]} : vector<32x256xf32> to vector<32x17xf32>
    %12 = vector.extract_strided_slice %3 {offsets = [0, 0], sizes = [32, 239], strides = [1, 1]} : vector<32x256xf32> to vector<32x239xf32>
    %13 = tpu.concatenate %11, %12 in 1 : vector<32x17xf32>, vector<32x239xf32> -> vector<32x256xf32>
    %14 = vector.broadcast %4 : vector<1x256xf32> to vector<32x256xf32>
    %15 = arith.mulf %13, %14 : vector<32x256xf32>
    %c8 = arith.constant 8 : index
    %c0_9 = arith.constant 0 : index
    %16 = vector.load %arg9[%c8, %c0_9] : memref<360x256xf32, #tpu.memory_space<vmem>>, vector<32x256xf32>
    tpu.vector_store %arg9[%c8, %c0_9], %15 {strides = array<i32>} : memref<360x256xf32, #tpu.memory_space<vmem>>, vector<32x256xf32>,
    %c1 = arith.constant 1 : index
    %c0_10 = arith.constant 0 : index
    %17 = vector.load %arg6[%c1, %c0_10] : memref<9x256xf32, #tpu.memory_space<vmem>>, vector<1x256xf32>
    %18 = vector.extract_strided_slice %1 {offsets = [0, 240], sizes = [8, 16], strides = [1, 1]} : vector<8x256xf32> to vector<8x16xf32>
    %19 = vector.extract_strided_slice %1 {offsets = [0, 0], sizes = [8, 240], strides = [1, 1]} : vector<8x256xf32> to vector<8x240xf32>
    %20 = tpu.concatenate %18, %19 in 1 : vector<8x16xf32>, vector<8x240xf32> -> vector<8x256xf32>
    %21 = vector.broadcast %17 : vector<1x256xf32> to vector<8x256xf32>
    %22 = arith.mulf %20, %21 : vector<8x256xf32>
    %c40 = arith.constant 40 : index
    %c0_11 = arith.constant 0 : index
    %23 = vector.load %arg9[%c40, %c0_11] : memref<360x256xf32, #tpu.memory_space<vmem>>, vector<8x256xf32>
    tpu.vector_store %arg9[%c40, %c0_11], %22 {strides = array<i32>} : memref<360x256xf32, #tpu.memory_space<vmem>>, vector<8x256xf32>,
    %24 = vector.extract_strided_slice %3 {offsets = [0, 240], sizes = [32, 16], strides = [1, 1]} : vector<32x256xf32> to vector<32x16xf32>
    %25 = vector.extract_strided_slice %3 {offsets = [0, 0], sizes = [32, 240], strides = [1, 1]} : vector<32x256xf32> to vector<32x240xf32>
    %26 = tpu.concatenate %24, %25 in 1 : vector<32x16xf32>, vector<32x240xf32> -> vector<32x256xf32>
    %27 = vector.broadcast %17 : vector<1x256xf32> to vector<32x256xf32>
    %28 = arith.mulf %26, %27 : vector<32x256xf32>
    %c48 = arith.constant 48 : index
    %c0_12 = arith.constant 0 : index
    %29 = vector.load %arg9[%c48, %c0_12] : memref<360x256xf32, #tpu.memory_space<vmem>>, vector<32x256xf32>
    tpu.vector_store %arg9[%c48, %c0_12], %28 {strides = array<i32>} : memref<360x256xf32, #tpu.memory_space<vmem>>, vector<32x256xf32>,
    %c2 = arith.constant 2 : index
    %c0_13 = arith.constant 0 : index
    %30 = vector.load %arg6[%c2, %c0_13] : memref<9x256xf32, #tpu.memory_space<vmem>>, vector<1x256xf32>
    %31 = vector.extract_strided_slice %1 {offsets = [0, 241], sizes = [8, 15], strides = [1, 1]} : vector<8x256xf32> to vector<8x15xf32>
    %32 = vector.extract_strided_slice %1 {offsets = [0, 0], sizes = [8, 241], strides = [1, 1]} : vector<8x256xf32> to vector<8x241xf32>
    %33 = tpu.concatenate %31, %32 in 1 : vector<8x15xf32>, vector<8x241xf32> -> vector<8x256xf32>
    %34 = vector.broadcast %30 : vector<1x256xf32> to vector<8x256xf32>
    %35 = arith.mulf %33, %34 : vector<8x256xf32>
    %c80 = arith.constant 80 : index
    %c0_14 = arith.constant 0 : index
    %36 = vector.load %arg9[%c80, %c0_14] : memref<360x256xf32, #tpu.memory_space<vmem>>, vector<8x256xf32>
    tpu.vector_store %arg9[%c80, %c0_14], %35 {strides = array<i32>} : memref<360x256xf32, #tpu.memory_space<vmem>>, vector<8x256xf32>,
    %37 = vector.extract_strided_slice %3 {offsets = [0, 241], sizes = [32, 15], strides = [1, 1]} : vector<32x256xf32> to vector<32x15xf32>
    %38 = vector.extract_strided_slice %3 {offsets = [0, 0], sizes = [32, 241], strides = [1, 1]} : vector<32x256xf32> to vector<32x241xf32>
    %39 = tpu.concatenate %37, %38 in 1 : vector<32x15xf32>, vector<32x241xf32> -> vector<32x256xf32>
    %40 = vector.broadcast %30 : vector<1x256xf32> to vector<32x256xf32>
    %41 = arith.mulf %39, %40 : vector<32x256xf32>
    %c88 = arith.constant 88 : index
    %c0_15 = arith.constant 0 : index
    %42 = vector.load %arg9[%c88, %c0_15] : memref<360x256xf32, #tpu.memory_space<vmem>>, vector<32x256xf32>
    tpu.vector_store %arg9[%c88, %c0_15], %41 {strides = array<i32>} : memref<360x256xf32, #tpu.memory_space<vmem>>, vector<32x256xf32>,
    %c3 = arith.constant 3 : index
    %c0_16 = arith.constant 0 : index
    %43 = vector.load %arg6[%c3, %c0_16] : memref<9x256xf32, #tpu.memory_space<vmem>>, vector<1x256xf32>
    %44 = vector.extract_strided_slice %1 {offsets = [0, 255], sizes = [8, 1], strides = [1, 1]} : vector<8x256xf32> to vector<8x1xf32>
    %45 = vector.extract_strided_slice %1 {offsets = [0, 0], sizes = [8, 255], strides = [1, 1]} : vector<8x256xf32> to vector<8x255xf32>
    %46 = tpu.concatenate %44, %45 in 1 : vector<8x1xf32>, vector<8x255xf32> -> vector<8x256xf32>
    %47 = vector.broadcast %43 : vector<1x256xf32> to vector<8x256xf32>
    %48 = arith.mulf %46, %47 : vector<8x256xf32>
    %c120 = arith.constant 120 : index
    %c0_17 = arith.constant 0 : index
    %49 = vector.load %arg9[%c120, %c0_17] : memref<360x256xf32, #tpu.memory_space<vmem>>, vector<8x256xf32>
    tpu.vector_store %arg9[%c120, %c0_17], %48 {strides = array<i32>} : memref<360x256xf32, #tpu.memory_space<vmem>>, vector<8x256xf32>,
    %50 = vector.extract_strided_slice %3 {offsets = [0, 255], sizes = [32, 1], strides = [1, 1]} : vector<32x256xf32> to vector<32x1xf32>
    %51 = vector.extract_strided_slice %3 {offsets = [0, 0], sizes = [32, 255], strides = [1, 1]} : vector<32x256xf32> to vector<32x255xf32>
    %52 = tpu.concatenate %50, %51 in 1 : vector<32x1xf32>, vector<32x255xf32> -> vector<32x256xf32>
    %53 = vector.broadcast %43 : vector<1x256xf32> to vector<32x256xf32>
    %54 = arith.mulf %52, %53 : vector<32x256xf32>
    %c128 = arith.constant 128 : index
    %c0_18 = arith.constant 0 : index
    %55 = vector.load %arg9[%c128, %c0_18] : memref<360x256xf32, #tpu.memory_space<vmem>>, vector<32x256xf32>
    tpu.vector_store %arg9[%c128, %c0_18], %54 {strides = array<i32>} : memref<360x256xf32, #tpu.memory_space<vmem>>, vector<32x256xf32>,
    %c4 = arith.constant 4 : index
    %c0_19 = arith.constant 0 : index
    %56 = vector.load %arg6[%c4, %c0_19] : memref<9x256xf32, #tpu.memory_space<vmem>>, vector<1x256xf32>
    %57 = vector.broadcast %56 : vector<1x256xf32> to vector<8x256xf32>
    %58 = arith.mulf %1, %57 : vector<8x256xf32>
    %c160 = arith.constant 160 : index
    %c0_20 = arith.constant 0 : index
    %59 = vector.load %arg9[%c160, %c0_20] : memref<360x256xf32, #tpu.memory_space<vmem>>, vector<8x256xf32>
    tpu.vector_store %arg9[%c160, %c0_20], %58 {strides = array<i32>} : memref<360x256xf32, #tpu.memory_space<vmem>>, vector<8x256xf32>,
    %60 = vector.broadcast %56 : vector<1x256xf32> to vector<32x256xf32>
    %61 = arith.mulf %3, %60 : vector<32x256xf32>
    %c168 = arith.constant 168 : index
    %c0_21 = arith.constant 0 : index
    %62 = vector.load %arg9[%c168, %c0_21] : memref<360x256xf32, #tpu.memory_space<vmem>>, vector<32x256xf32>
    tpu.vector_store %arg9[%c168, %c0_21], %61 {strides = array<i32>} : memref<360x256xf32, #tpu.memory_space<vmem>>, vector<32x256xf32>,
    %c5 = arith.constant 5 : index
    %c0_22 = arith.constant 0 : index
    %63 = vector.load %arg6[%c5, %c0_22] : memref<9x256xf32, #tpu.memory_space<vmem>>, vector<1x256xf32>
    %64 = vector.extract_strided_slice %1 {offsets = [0, 1], sizes = [8, 255], strides = [1, 1]} : vector<8x256xf32> to vector<8x255xf32>
    %65 = vector.extract_strided_slice %1 {offsets = [0, 0], sizes = [8, 1], strides = [1, 1]} : vector<8x256xf32> to vector<8x1xf32>
    %66 = tpu.concatenate %64, %65 in 1 : vector<8x255xf32>, vector<8x1xf32> -> vector<8x256xf32>
    %67 = vector.broadcast %63 : vector<1x256xf32> to vector<8x256xf32>
    %68 = arith.mulf %66, %67 : vector<8x256xf32>
    %c200 = arith.constant 200 : index
    %c0_23 = arith.constant 0 : index
    %69 = vector.load %arg9[%c200, %c0_23] : memref<360x256xf32, #tpu.memory_space<vmem>>, vector<8x256xf32>
    tpu.vector_store %arg9[%c200, %c0_23], %68 {strides = array<i32>} : memref<360x256xf32, #tpu.memory_space<vmem>>, vector<8x256xf32>,
    %70 = vector.extract_strided_slice %3 {offsets = [0, 1], sizes = [32, 255], strides = [1, 1]} : vector<32x256xf32> to vector<32x255xf32>
    %71 = vector.extract_strided_slice %3 {offsets = [0, 0], sizes = [32, 1], strides = [1, 1]} : vector<32x256xf32> to vector<32x1xf32>
    %72 = tpu.concatenate %70, %71 in 1 : vector<32x255xf32>, vector<32x1xf32> -> vector<32x256xf32>
    %73 = vector.broadcast %63 : vector<1x256xf32> to vector<32x256xf32>
    %74 = arith.mulf %72, %73 : vector<32x256xf32>
    %c208 = arith.constant 208 : index
    %c0_24 = arith.constant 0 : index
    %75 = vector.load %arg9[%c208, %c0_24] : memref<360x256xf32, #tpu.memory_space<vmem>>, vector<32x256xf32>
    tpu.vector_store %arg9[%c208, %c0_24], %74 {strides = array<i32>} : memref<360x256xf32, #tpu.memory_space<vmem>>, vector<32x256xf32>,
    %c6 = arith.constant 6 : index
    %c0_25 = arith.constant 0 : index
    %76 = vector.load %arg6[%c6, %c0_25] : memref<9x256xf32, #tpu.memory_space<vmem>>, vector<1x256xf32>
    %77 = vector.extract_strided_slice %1 {offsets = [0, 15], sizes = [8, 241], strides = [1, 1]} : vector<8x256xf32> to vector<8x241xf32>
    %78 = vector.extract_strided_slice %1 {offsets = [0, 0], sizes = [8, 15], strides = [1, 1]} : vector<8x256xf32> to vector<8x15xf32>
    %79 = tpu.concatenate %77, %78 in 1 : vector<8x241xf32>, vector<8x15xf32> -> vector<8x256xf32>
    %80 = vector.broadcast %76 : vector<1x256xf32> to vector<8x256xf32>
    %81 = arith.mulf %79, %80 : vector<8x256xf32>
    %c240 = arith.constant 240 : index
    %c0_26 = arith.constant 0 : index
    %82 = vector.load %arg9[%c240, %c0_26] : memref<360x256xf32, #tpu.memory_space<vmem>>, vector<8x256xf32>
    tpu.vector_store %arg9[%c240, %c0_26], %81 {strides = array<i32>} : memref<360x256xf32, #tpu.memory_space<vmem>>, vector<8x256xf32>,
    %83 = vector.extract_strided_slice %3 {offsets = [0, 15], sizes = [32, 241], strides = [1, 1]} : vector<32x256xf32> to vector<32x241xf32>
    %84 = vector.extract_strided_slice %3 {offsets = [0, 0], sizes = [32, 15], strides = [1, 1]} : vector<32x256xf32> to vector<32x15xf32>
    %85 = tpu.concatenate %83, %84 in 1 : vector<32x241xf32>, vector<32x15xf32> -> vector<32x256xf32>
    %86 = vector.broadcast %76 : vector<1x256xf32> to vector<32x256xf32>
    %87 = arith.mulf %85, %86 : vector<32x256xf32>
    %c248 = arith.constant 248 : index
    %c0_27 = arith.constant 0 : index
    %88 = vector.load %arg9[%c248, %c0_27] : memref<360x256xf32, #tpu.memory_space<vmem>>, vector<32x256xf32>
    tpu.vector_store %arg9[%c248, %c0_27], %87 {strides = array<i32>} : memref<360x256xf32, #tpu.memory_space<vmem>>, vector<32x256xf32>,
    %c7 = arith.constant 7 : index
    %c0_28 = arith.constant 0 : index
    %89 = vector.load %arg6[%c7, %c0_28] : memref<9x256xf32, #tpu.memory_space<vmem>>, vector<1x256xf32>
    %90 = vector.extract_strided_slice %1 {offsets = [0, 16], sizes = [8, 240], strides = [1, 1]} : vector<8x256xf32> to vector<8x240xf32>
    %91 = vector.extract_strided_slice %1 {offsets = [0, 0], sizes = [8, 16], strides = [1, 1]} : vector<8x256xf32> to vector<8x16xf32>
    %92 = tpu.concatenate %90, %91 in 1 : vector<8x240xf32>, vector<8x16xf32> -> vector<8x256xf32>
    %93 = vector.broadcast %89 : vector<1x256xf32> to vector<8x256xf32>
    %94 = arith.mulf %92, %93 : vector<8x256xf32>
    %c280 = arith.constant 280 : index
    %c0_29 = arith.constant 0 : index
    %95 = vector.load %arg9[%c280, %c0_29] : memref<360x256xf32, #tpu.memory_space<vmem>>, vector<8x256xf32>
    tpu.vector_store %arg9[%c280, %c0_29], %94 {strides = array<i32>} : memref<360x256xf32, #tpu.memory_space<vmem>>, vector<8x256xf32>,
    %96 = vector.extract_strided_slice %3 {offsets = [0, 16], sizes = [32, 240], strides = [1, 1]} : vector<32x256xf32> to vector<32x240xf32>
    %97 = vector.extract_strided_slice %3 {offsets = [0, 0], sizes = [32, 16], strides = [1, 1]} : vector<32x256xf32> to vector<32x16xf32>
    %98 = tpu.concatenate %96, %97 in 1 : vector<32x240xf32>, vector<32x16xf32> -> vector<32x256xf32>
    %99 = vector.broadcast %89 : vector<1x256xf32> to vector<32x256xf32>
    %100 = arith.mulf %98, %99 : vector<32x256xf32>
    %c288 = arith.constant 288 : index
    %c0_30 = arith.constant 0 : index
    %101 = vector.load %arg9[%c288, %c0_30] : memref<360x256xf32, #tpu.memory_space<vmem>>, vector<32x256xf32>
    tpu.vector_store %arg9[%c288, %c0_30], %100 {strides = array<i32>} : memref<360x256xf32, #tpu.memory_space<vmem>>, vector<32x256xf32>,
    %c8_31 = arith.constant 8 : index
    %c0_32 = arith.constant 0 : index
    %102 = vector.load %arg6[%c8_31, %c0_32] : memref<9x256xf32, #tpu.memory_space<vmem>>, vector<1x256xf32>
    %103 = vector.extract_strided_slice %1 {offsets = [0, 17], sizes = [8, 239], strides = [1, 1]} : vector<8x256xf32> to vector<8x239xf32>
    %104 = vector.extract_strided_slice %1 {offsets = [0, 0], sizes = [8, 17], strides = [1, 1]} : vector<8x256xf32> to vector<8x17xf32>
    %105 = tpu.concatenate %103, %104 in 1 : vector<8x239xf32>, vector<8x17xf32> -> vector<8x256xf32>
    %106 = vector.broadcast %102 : vector<1x256xf32> to vector<8x256xf32>
    %107 = arith.mulf %105, %106 : vector<8x256xf32>
    %c320 = arith.constant 320 : index
    %c0_33 = arith.constant 0 : index
    %108 = vector.load %arg9[%c320, %c0_33] : memref<360x256xf32, #tpu.memory_space<vmem>>, vector<8x256xf32>
    tpu.vector_store %arg9[%c320, %c0_33], %107 {strides = array<i32>} : memref<360x256xf32, #tpu.memory_space<vmem>>, vector<8x256xf32>,
    %109 = vector.extract_strided_slice %3 {offsets = [0, 17], sizes = [32, 239], strides = [1, 1]} : vector<32x256xf32> to vector<32x239xf32>
    %110 = vector.extract_strided_slice %3 {offsets = [0, 0], sizes = [32, 17], strides = [1, 1]} : vector<32x256xf32> to vector<32x17xf32>
    %111 = tpu.concatenate %109, %110 in 1 : vector<32x239xf32>, vector<32x17xf32> -> vector<32x256xf32>
    %112 = vector.broadcast %102 : vector<1x256xf32> to vector<32x256xf32>
    %113 = arith.mulf %111, %112 : vector<32x256xf32>
    %c328 = arith.constant 328 : index
    %c0_34 = arith.constant 0 : index
    %114 = vector.load %arg9[%c328, %c0_34] : memref<360x256xf32, #tpu.memory_space<vmem>>, vector<32x256xf32>
    tpu.vector_store %arg9[%c328, %c0_34], %113 {strides = array<i32>} : memref<360x256xf32, #tpu.memory_space<vmem>>, vector<32x256xf32>,
    %c0_35 = arith.constant 0 : index
    %c0_36 = arith.constant 0 : index
    %115 = vector.load %arg4[%c0_35, %c0_36] : memref<128x360xf32, #tpu.memory_space<vmem>>, vector<128x360xf32>
    %c0_37 = arith.constant 0 : index
    %c0_38 = arith.constant 0 : index
    %116 = vector.load %arg9[%c0_37, %c0_38] : memref<360x256xf32, #tpu.memory_space<vmem>>, vector<360x256xf32>
    %cst = arith.constant dense<0.000000e+00> : vector<128x256xf32>
    %117 = tpu.matmul %115, %116, %cst {dimension_numbers = #tpu.dot_dimension_numbers<[1], [0], [0], [1], [0, 0, 1, 1], [], []>} : vector<128x360xf32>, vector<360x256xf32>, vector<128x256xf32> -> vector<128x256xf32>
    %c0_39 = arith.constant 0 : index
    %c0_40 = arith.constant 0 : index
    %118 = vector.load %arg5[%c0_39, %c0_40] : memref<128x1xf32, #tpu.memory_space<vmem>>, vector<128x1xf32>
    %119 = vector.broadcast %118 : vector<128x1xf32> to vector<128x256xf32>
    %120 = arith.addf %117, %119 : vector<128x256xf32>
    %c0_41 = arith.constant 0 : index
    %c0_42 = arith.constant 0 : index
    %c0_43 = arith.constant 0 : index
    %121 = vector.load %arg3[%c0_41, %c0_42, %c0_43] : memref<1x32x256xf32, #tpu.memory_space<vmem>>, vector<1x32x256xf32>
    %122 = vector.shape_cast %121 : vector<1x32x256xf32> to vector<32x256xf32>
    %123 = vector.extract_strided_slice %120 {offsets = [32, 0], sizes = [32, 256], strides = [1, 1]} : vector<128x256xf32> to vector<32x256xf32>
    %124 = arith.negf %123 : vector<32x256xf32>
    %125 = math.exp %124 : vector<32x256xf32>
    %cst_44 = arith.constant 1.000000e+00 : f32
    %126 = vector.broadcast %cst_44 : f32 to vector<32x256xf32>
    %127 = arith.addf %126, %125 : vector<32x256xf32>
    %128 = arith.divf %126, %127 : vector<32x256xf32>
    %129 = arith.mulf %128, %122 : vector<32x256xf32>
    %130 = vector.extract_strided_slice %120 {offsets = [0, 0], sizes = [32, 256], strides = [1, 1]} : vector<128x256xf32> to vector<32x256xf32>
    %131 = arith.negf %130 : vector<32x256xf32>
    %132 = math.exp %131 : vector<32x256xf32>
    %cst_45 = arith.constant 1.000000e+00 : f32
    %133 = vector.broadcast %cst_45 : f32 to vector<32x256xf32>
    %134 = arith.addf %133, %132 : vector<32x256xf32>
    %135 = arith.divf %133, %134 : vector<32x256xf32>
    %136 = vector.extract_strided_slice %120 {offsets = [96, 0], sizes = [32, 256], strides = [1, 1]} : vector<128x256xf32> to vector<32x256xf32>
    %137 = math.tanh %136 : vector<32x256xf32>
    %138 = arith.mulf %135, %137 : vector<32x256xf32>
    %139 = arith.addf %129, %138 : vector<32x256xf32>
    %c0_46 = arith.constant 0 : index
    %c0_47 = arith.constant 0 : index
    %c0_48 = arith.constant 0 : index
    %140 = vector.load %arg8[%c0_46, %c0_47, %c0_48] : memref<1x32x256xf32, #tpu.memory_space<vmem>>, vector<1x32x256xf32>
    %141 = vector.shape_cast %140 : vector<1x32x256xf32> to vector<32x256xf32>
    %142 = vector.shape_cast %139 : vector<32x256xf32> to vector<1x32x256xf32>
    tpu.vector_store %arg8[%c0_46, %c0_47, %c0_48], %142 {strides = array<i32>} : memref<1x32x256xf32, #tpu.memory_space<vmem>>, vector<1x32x256xf32>,
    %143 = vector.extract_strided_slice %120 {offsets = [64, 0], sizes = [32, 256], strides = [1, 1]} : vector<128x256xf32> to vector<32x256xf32>
    %144 = arith.negf %143 : vector<32x256xf32>
    %145 = math.exp %144 : vector<32x256xf32>
    %cst_49 = arith.constant 1.000000e+00 : f32
    %146 = vector.broadcast %cst_49 : f32 to vector<32x256xf32>
    %147 = arith.addf %146, %145 : vector<32x256xf32>
    %148 = arith.divf %146, %147 : vector<32x256xf32>
    %149 = math.tanh %139 : vector<32x256xf32>
    %150 = arith.mulf %148, %149 : vector<32x256xf32>
    %c0_50 = arith.constant 0 : index
    %c0_51 = arith.constant 0 : index
    %c0_52 = arith.constant 0 : index
    %151 = vector.load %arg7[%c0_50, %c0_51, %c0_52] : memref<1x32x256xf32, #tpu.memory_space<vmem>>, vector<1x32x256xf32>
    %152 = vector.shape_cast %151 : vector<1x32x256xf32> to vector<32x256xf32>
    %153 = vector.shape_cast %150 : vector<32x256xf32> to vector<1x32x256xf32>
    tpu.vector_store %arg7[%c0_50, %c0_51, %c0_52], %153 {strides = array<i32>} : memref<1x32x256xf32, #tpu.memory_space<vmem>>, vector<1x32x256xf32>,
    return
  }
  func.func @transform_0(%arg0: i32) -> (i32, i32, i32) {
    %c0_i32 = arith.constant 0 : i32
    %c0_i32_0 = arith.constant 0 : i32
    %c0_i32_1 = arith.constant 0 : i32
    return %arg0, %c0_i32, %c0_i32_0 : i32, i32, i32
  }
  func.func @transform_1(%arg0: i32) -> (i32, i32, i32) {
    %c0_i32 = arith.constant 0 : i32
    %c0_i32_0 = arith.constant 0 : i32
    %c0_i32_1 = arith.constant 0 : i32
    return %arg0, %c0_i32, %c0_i32_0 : i32, i32, i32
  }
  func.func @transform_2(%arg0: i32) -> (i32, i32, i32) {
    %c0_i32 = arith.constant 0 : i32
    %c0_i32_0 = arith.constant 0 : i32
    %c0_i32_1 = arith.constant 0 : i32
    return %arg0, %c0_i32, %c0_i32_0 : i32, i32, i32
  }
  func.func @transform_3(%arg0: i32) -> (i32, i32) {
    %c0_i32 = arith.constant 0 : i32
    %c0_i32_0 = arith.constant 0 : i32
    %c0_i32_1 = arith.constant 0 : i32
    return %c0_i32, %c0_i32_0 : i32, i32
  }
  func.func @transform_4(%arg0: i32) -> (i32, i32) {
    %c0_i32 = arith.constant 0 : i32
    %c0_i32_0 = arith.constant 0 : i32
    %c0_i32_1 = arith.constant 0 : i32
    return %c0_i32, %c0_i32_0 : i32, i32
  }
  func.func @transform_5(%arg0: i32) -> (i32, i32) {
    %c0_i32 = arith.constant 0 : i32
    %c0_i32_0 = arith.constant 0 : i32
    %c0_i32_1 = arith.constant 0 : i32
    return %c0_i32, %c0_i32_0 : i32, i32
  }
  func.func @transform_6(%arg0: i32) -> (i32, i32, i32) {
    %c0_i32 = arith.constant 0 : i32
    %c0_i32_0 = arith.constant 0 : i32
    %c0_i32_1 = arith.constant 0 : i32
    return %arg0, %c0_i32, %c0_i32_0 : i32, i32, i32
  }
  func.func @transform_7(%arg0: i32) -> (i32, i32, i32) {
    %c0_i32 = arith.constant 0 : i32
    %c0_i32_0 = arith.constant 0 : i32
    %c0_i32_1 = arith.constant 0 : i32
    return %arg0, %c0_i32, %c0_i32_0 : i32, i32, i32
  }
}

</mosaic_0001>

<llo_original>
// kernel: tpu_custom_call.1
$region0: #{tpu_custom_call.1}
  #allocation0 [shape = 'u32[]', space=smem, size = 0x4, offset = 0x4, fixed_abs, tag = 'smem constant byte address 0x4 - core index']
  #allocation1 [shape = 'u32[144,128]{1,0:T(1,128)}', space=vmem, size = 0x12000, scoped, tag = 'internal scratch']
  #allocation2 [shape = 'f32[360,256]{1,0:T(8,128)}', space=vmem, size = 0x5a000, scoped, tag = 'scratch operand']
  %s0 = inlined_call_operand.vmem [shape: f32[2,8,256], index: 0, kind: input, shape index: {}]
  %s1 = inlined_call_operand.vmem [shape: f32[2,32,256], index: 1, kind: input, shape index: {}]
  %s2 = inlined_call_operand.vmem [shape: f32[2,32,256], index: 2, kind: input, shape index: {}]
  %s3 = inlined_call_operand.vmem [shape: f32[128,360], index: 3, kind: input, shape index: {}]
  %s4 = inlined_call_operand.vmem [shape: f32[128,1], index: 4, kind: input, shape index: {}]
  %s5 = inlined_call_operand.vmem [shape: f32[9,256], index: 5, kind: input, shape index: {}]
  %s6 = inlined_call_operand.hbm [shape: f32[2,32,256], index: 6, kind: output, shape index: {0}]
  %s7 = inlined_call_operand.hbm [shape: f32[2,32,256], index: 7, kind: output, shape index: {1}]
  %8 = xla_tuple %s6, %s7
  %s9 = sld [smem:[#allocation0]]
  $region65: #{tpu_custom_call.1} parent=0
    _
  %s11 = ssub.s32 1, %s9
  %s12 = scalar_select 0, %s11, %s9
  $region1: #{tpu_custom_call.1} parent=0
    #allocation3 [shape = 'u8[65536]{0}', space=vmem, size = 0x10000, scoped, tag = 'output window, operand 0']
    #allocation4 [shape = 's32[2]{0}', space=sflag, size = 0x8, scoped, tag = 'scoped memory for tpu_custom_call.1']
    #allocation5 [shape = 'u8[65536]{0}', space=vmem, size = 0x10000, scoped, tag = 'output window, operand 1']
    #allocation6 [shape = 's32[2]{0}', space=sflag, size = 0x8, scoped, tag = 'scoped memory for tpu_custom_call.1']
    %13 = vsyncpa [#allocation4], 0
    %s14 = scalar_lea.sflag [#allocation4], 1
    %15 = vsyncpa %s14, 0
    %16 = vsyncpa [#allocation6], 0
    %s17 = scalar_lea.sflag [#allocation6], 1
    %18 = vsyncpa %s17, 0
    loop: start=0, step=1, limit=4
    $region2: #{tpu_custom_call.1} parent=1 // loop_pre_header
      _
    $region3: #{tpu_custom_call.1} parent=1 // loop_header
      %s20 = sphi 0, %s24
      %p21 = scmp.ge.s32.totalorder %s20, 4
      %s30 = sphi 0, %s32
      %s33 = sphi 0, %s30
      %s34 = sphi 0, %s33
      %s50 = sphi 0, %s34
      %s56 = sphi 0, %s58
      %s59 = sphi 0, %s56
      %s60 = sphi 0, %s59
      %s76 = sphi 0, %s60
      %s82 = sphi 0, %s84
      %s85 = sphi 0, %s82
      %s86 = sphi 0, %s85
      %s102 = sphi 0, %s86
      %s106 = sphi 0, %s106
      %s108 = sphi 0, %s106
      %s109 = sphi 0, %s108
      %s123 = sphi 0, %s109
      %s127 = sphi 0, %s127
      %s129 = sphi 0, %s127
      %s130 = sphi 0, %s129
      %s144 = sphi 0, %s130
      %s148 = sphi 0, %s148
      %s150 = sphi 0, %s148
      %s151 = sphi 0, %s150
      %s165 = sphi 0, %s151
      %s171 = sphi 0, %s173
      %s174 = sphi 0, %s171
      %s175 = sphi 0, %s174
      %s191 = sphi 0, %s175
      %s197 = sphi 0, %s199
      %s200 = sphi 0, %s197
      %s201 = sphi 0, %s200
      %s217 = sphi 0, %s201
    $region4: #{tpu_custom_call.1} parent=1 // loop_header_branch
      %23 = sbr.rel (%p21) target = $region8
    $region5: #{tpu_custom_call.1} parent=1 // loop_body
      %s25 = ssub.s32 %s20, 1
      %s26 = ssub.s32 %s20, 2
      %s27 = sadd.s32 %s20, 1
      %s28 = ssub.s32 %s20, %s27
      %p29 = scmp.eq.s32.totalorder %s28, 0
      %s31 = sadd.s32 %s30, 1
      %s32 = scalar_select %p29, %s30, %s31
      %p35 = pneg %p29
      %p36 = scmp.eq.s32.totalorder %s20, 1
      %p37 = por %p35, %p36
      %p38 = scmp.ne.s32.totalorder %s30, %s33
      %p39 = scmp.eq.s32.totalorder %s20, 0
      %p40 = por %p38, %p39
      %p41 = scmp.ne.s32.totalorder %s30, %s33
      %p42 = scmp.eq.s32.totalorder %s25, 1
      %p43 = por %p41, %p42
      %p44 = scmp.ne.s32.totalorder %s33, %s34
      %p45 = scmp.eq.s32.totalorder %s25, 0
      %p46 = por %p44, %p45
      %p47 = scmp.ne.s32.totalorder %s33, %s34
      %p48 = scmp.eq.s32.totalorder %s26, 1
      %p49 = por %p47, %p48
      %p51 = scmp.ne.s32.totalorder %s34, %s50
      %p52 = scmp.eq.s32.totalorder %s26, 0
      %p53 = por %p51, %p52
      %s54 = ssub.s32 %s20, %s27
      %p55 = scmp.eq.s32.totalorder %s54, 0
      %s57 = sadd.s32 %s56, 1
      %s58 = scalar_select %p55, %s56, %s57
      %p61 = pneg %p55
      %p62 = scmp.eq.s32.totalorder %s20, 1
      %p63 = por %p61, %p62
      %p64 = scmp.ne.s32.totalorder %s56, %s59
      %p65 = scmp.eq.s32.totalorder %s20, 0
      %p66 = por %p64, %p65
      %p67 = scmp.ne.s32.totalorder %s56, %s59
      %p68 = scmp.eq.s32.totalorder %s25, 1
      %p69 = por %p67, %p68
      %p70 = scmp.ne.s32.totalorder %s59, %s60
      %p71 = scmp.eq.s32.totalorder %s25, 0
      %p72 = por %p70, %p71
      %p73 = scmp.ne.s32.totalorder %s59, %s60
      %p74 = scmp.eq.s32.totalorder %s26, 1
      %p75 = por %p73, %p74
      %p77 = scmp.ne.s32.totalorder %s60, %s76
      %p78 = scmp.eq.s32.totalorder %s26, 0
      %p79 = por %p77, %p78
      %s80 = ssub.s32 %s20, %s27
      %p81 = scmp.eq.s32.totalorder %s80, 0
      %s83 = sadd.s32 %s82, 1
      %s84 = scalar_select %p81, %s82, %s83
      %p87 = pneg %p81
      %p88 = scmp.eq.s32.totalorder %s20, 1
      %p89 = por %p87, %p88
      %p90 = scmp.ne.s32.totalorder %s82, %s85
      %p91 = scmp.eq.s32.totalorder %s20, 0
      %p92 = por %p90, %p91
      %p93 = scmp.ne.s32.totalorder %s82, %s85
      %p94 = scmp.eq.s32.totalorder %s25, 1
      %p95 = por %p93, %p94
      %p96 = scmp.ne.s32.totalorder %s85, %s86
      %p97 = scmp.eq.s32.totalorder %s25, 0
      %p98 = por %p96, %p97
      %p99 = scmp.ne.s32.totalorder %s85, %s86
      %p100 = scmp.eq.s32.totalorder %s26, 1
      %p101 = por %p99, %p100
      %p103 = scmp.ne.s32.totalorder %s86, %s102
      %p104 = scmp.eq.s32.totalorder %s26, 0
      %p105 = por %p103, %p104
      %s107 = sadd.s32 %s106, 1
      %p110 = scmp.eq.s32.totalorder %s20, 1
      %p111 = scmp.ne.s32.totalorder %s106, %s108
      %p112 = scmp.eq.s32.totalorder %s20, 0
      %p113 = por %p111, %p112
      %p114 = scmp.ne.s32.totalorder %s106, %s108
      %p115 = scmp.eq.s32.totalorder %s25, 1
      %p116 = por %p114, %p115
      %p117 = scmp.ne.s32.totalorder %s108, %s109
      %p118 = scmp.eq.s32.totalorder %s25, 0
      %p119 = por %p117, %p118
      %p120 = scmp.ne.s32.totalorder %s108, %s109
      %p121 = scmp.eq.s32.totalorder %s26, 1
      %p122 = por %p120, %p121
      %p124 = scmp.ne.s32.totalorder %s109, %s123
      %p125 = scmp.eq.s32.totalorder %s26, 0
      %p126 = por %p124, %p125
      %s128 = sadd.s32 %s127, 1
      %p131 = scmp.eq.s32.totalorder %s20, 1
      %p132 = scmp.ne.s32.totalorder %s127, %s129
      %p133 = scmp.eq.s32.totalorder %s20, 0
      %p134 = por %p132, %p133
      %p135 = scmp.ne.s32.totalorder %s127, %s129
      %p136 = scmp.eq.s32.totalorder %s25, 1
      %p137 = por %p135, %p136
      %p138 = scmp.ne.s32.totalorder %s129, %s130
      %p139 = scmp.eq.s32.totalorder %s25, 0
      %p140 = por %p138, %p139
      %p141 = scmp.ne.s32.totalorder %s129, %s130
      %p142 = scmp.eq.s32.totalorder %s26, 1
      %p143 = por %p141, %p142
      %p145 = scmp.ne.s32.totalorder %s130, %s144
      %p146 = scmp.eq.s32.totalorder %s26, 0
      %p147 = por %p145, %p146
      %s149 = sadd.s32 %s148, 1
      %p152 = scmp.eq.s32.totalorder %s20, 1
      %p153 = scmp.ne.s32.totalorder %s148, %s150
      %p154 = scmp.eq.s32.totalorder %s20, 0
      %p155 = por %p153, %p154
      %p156 = scmp.ne.s32.totalorder %s148, %s150
      %p157 = scmp.eq.s32.totalorder %s25, 1
      %p158 = por %p156, %p157
      %p159 = scmp.ne.s32.totalorder %s150, %s151
      %p160 = scmp.eq.s32.totalorder %s25, 0
      %p161 = por %p159, %p160
      %p162 = scmp.ne.s32.totalorder %s150, %s151
      %p163 = scmp.eq.s32.totalorder %s26, 1
      %p164 = por %p162, %p163
      %p166 = scmp.ne.s32.totalorder %s151, %s165
      %p167 = scmp.eq.s32.totalorder %s26, 0
      %p168 = por %p166, %p167
      %s169 = ssub.s32 %s20, %s27
      %p170 = scmp.eq.s32.totalorder %s169, 0
      %s172 = sadd.s32 %s171, 1
      %s173 = scalar_select %p170, %s171, %s172
      %p176 = pneg %p170
      %p177 = scmp.eq.s32.totalorder %s20, 1
      %p178 = por %p176, %p177
      %p179 = scmp.ne.s32.totalorder %s171, %s174
      %p180 = scmp.eq.s32.totalorder %s20, 0
      %p181 = por %p179, %p180
      %p182 = scmp.ne.s32.totalorder %s171, %s174
      %p183 = scmp.eq.s32.totalorder %s25, 1
      %p184 = por %p182, %p183
      %p185 = scmp.ne.s32.totalorder %s174, %s175
      %p186 = scmp.eq.s32.totalorder %s25, 0
      %p187 = por %p185, %p186
      %p188 = scmp.ne.s32.totalorder %s174, %s175
      %p189 = scmp.eq.s32.totalorder %s26, 1
      %p190 = por %p188, %p189
      %p192 = scmp.ne.s32.totalorder %s175, %s191
      %p193 = scmp.eq.s32.totalorder %s26, 0
      %p194 = por %p192, %p193
      %s195 = ssub.s32 %s20, %s27
      %p196 = scmp.eq.s32.totalorder %s195, 0
      %s198 = sadd.s32 %s197, 1
      %s199 = scalar_select %p196, %s197, %s198
      %p202 = pneg %p196
      %p203 = scmp.eq.s32.totalorder %s20, 1
      %p204 = por %p202, %p203
      %p205 = scmp.ne.s32.totalorder %s197, %s200
      %p206 = scmp.eq.s32.totalorder %s20, 0
      %p207 = por %p205, %p206
      %p208 = scmp.ne.s32.totalorder %s197, %s200
      %p209 = scmp.eq.s32.totalorder %s25, 1
      %p210 = por %p208, %p209
      %p211 = scmp.ne.s32.totalorder %s200, %s201
      %p212 = scmp.eq.s32.totalorder %s25, 0
      %p213 = por %p211, %p212
      %p214 = scmp.ne.s32.totalorder %s200, %s201
      %p215 = scmp.eq.s32.totalorder %s26, 1
      %p216 = por %p214, %p215
      %p218 = scmp.ne.s32.totalorder %s201, %s217
      %p219 = scmp.eq.s32.totalorder %s26, 0
      %p220 = por %p218, %p219
      %p221 = scmp.le.s32.totalorder 1, %s20
      %p222 = scmp.lt.s32.totalorder %s20, 3
      %p223 = pnand %p221, %p222
      %p224 = pneg %p223
      // Predicated region
      $region9: #{tpu_custom_call.1} parent=5 // pred_check
        _
      $region10: #{tpu_custom_call.1} parent=5 // pred_check_branch
        %226 = sbr.rel (%p223) target = $region12
      $region11: #{tpu_custom_call.1} parent=5 // pred_region
        %s227 = ssub.s32 %s20, 1
        // Predicated region
        $region13: #{tpu_custom_call.1} parent=11 // pred_check
          %p228 = pneg %p119
        $region14: #{tpu_custom_call.1} parent=11 // pred_check_branch
          %230 = sbr.rel (%p228) target = $region16
        $region15: #{tpu_custom_call.1} parent=11 // pred_region
          _
        $region16: #{tpu_custom_call.1} parent=11 // pred_fallthru
          _
        // Predicated region
        $region17: #{tpu_custom_call.1} parent=11 // pred_check
          %p231 = pneg %p140
        $region18: #{tpu_custom_call.1} parent=11 // pred_check_branch
          %233 = sbr.rel (%p231) target = $region20
        $region19: #{tpu_custom_call.1} parent=11 // pred_region
          _
        $region20: #{tpu_custom_call.1} parent=11 // pred_fallthru
          _
        // Predicated region
        $region21: #{tpu_custom_call.1} parent=11 // pred_check
          %p234 = pneg %p161
        $region22: #{tpu_custom_call.1} parent=11 // pred_check_branch
          %236 = sbr.rel (%p234) target = $region24
        $region23: #{tpu_custom_call.1} parent=11 // pred_region
          _
        $region24: #{tpu_custom_call.1} parent=11 // pred_fallthru
          _
      $region12: #{tpu_custom_call.1} parent=5 // pred_fallthru
        _
      %p237 = scmp.lt.s32.totalorder %s20, 2
      // Predicated region
      $region25: #{tpu_custom_call.1} parent=5 // pred_check
        %p238 = pneg %p237
      $region26: #{tpu_custom_call.1} parent=5 // pred_check_branch
        %240 = sbr.rel (%p238) target = $region28
      $region27: #{tpu_custom_call.1} parent=5 // pred_region
        // Predicated region
        $region29: #{tpu_custom_call.1} parent=27 // pred_check
          %p241 = pneg %p40
        $region30: #{tpu_custom_call.1} parent=27 // pred_check_branch
          %243 = sbr.rel (%p241) target = $region32
        $region31: #{tpu_custom_call.1} parent=27 // pred_region
          %p244 = scmp.lt.s32.totalorder %s20, 1
          %s245 = scalar_select %p244, %s20, 1
          %s246 = smul.addr %s245, 2
          %s247 = smul.addr %s246, 8
          %s248 = scalar_lea.vmem %s0, %s247
        $region32: #{tpu_custom_call.1} parent=27 // pred_fallthru
          _
        // Predicated region
        $region33: #{tpu_custom_call.1} parent=27 // pred_check
          %p249 = pneg %p66
        $region34: #{tpu_custom_call.1} parent=27 // pred_check_branch
          %251 = sbr.rel (%p249) target = $region36
        $region35: #{tpu_custom_call.1} parent=27 // pred_region
          %p252 = scmp.lt.s32.totalorder %s20, 1
          %s253 = scalar_select %p252, %s20, 1
          %s254 = smul.addr %s253, 8
          %s255 = smul.addr %s254, 8
          %s256 = scalar_lea.vmem %s1, %s255
        $region36: #{tpu_custom_call.1} parent=27 // pred_fallthru
          _
        // Predicated region
        $region37: #{tpu_custom_call.1} parent=27 // pred_check
          %p257 = pneg %p92
        $region38: #{tpu_custom_call.1} parent=27 // pred_check_branch
          %259 = sbr.rel (%p257) target = $region40
        $region39: #{tpu_custom_call.1} parent=27 // pred_region
          %p260 = scmp.lt.s32.totalorder %s20, 1
          %s261 = scalar_select %p260, %s20, 1
          %s262 = smul.addr %s261, 8
          %s263 = smul.addr %s262, 8
          %s264 = scalar_lea.vmem %s2, %s263
        $region40: #{tpu_custom_call.1} parent=27 // pred_fallthru
          _
      $region28: #{tpu_custom_call.1} parent=5 // pred_fallthru
        _
      %p265 = scmp.le.s32.totalorder 1, %s20
      %p266 = scmp.lt.s32.totalorder %s20, 3
      %p267 = pnand %p265, %p266
      %p268 = pneg %p267
      // Predicated region
      $region41: #{tpu_custom_call.1} parent=5 // pred_check
        _
      $region42: #{tpu_custom_call.1} parent=5 // pred_check_branch
        %270 = sbr.rel (%p267) target = $region44
      $region43: #{tpu_custom_call.1} parent=5 // pred_region
        %s271 = ssub.s32 %s20, 1
        %p272 = scmp.lt.s32.totalorder %s25, 1
        %s273 = scalar_select %p272, %s25, 1
        %s274 = smul.addr %s273, 2
        %s275 = smul.addr %s274, 8
        %s276 = scalar_lea.vmem %s0, %s275
        %p277 = pneg %p46
        %p278 = pneg %p43
        %p279 = scmp.lt.s32.totalorder %s25, 1
        %s280 = scalar_select %p279, %s25, 1
        %s281 = smul.addr %s280, 8
        %s282 = smul.addr %s281, 8
        %s283 = scalar_lea.vmem %s1, %s282
        %p284 = pneg %p72
        %p285 = pneg %p69
        %p286 = scmp.lt.s32.totalorder %s25, 1
        %s287 = scalar_select %p286, %s25, 1
        %s288 = smul.addr %s287, 8
        %s289 = smul.addr %s288, 8
        %s290 = scalar_lea.vmem %s2, %s289
        %p291 = pneg %p98
        %p292 = pneg %p95
        %p293 = pneg %p119
        %p294 = pneg %p116
        %p295 = pneg %p140
        %p296 = pneg %p137
        %p297 = pneg %p161
        %p298 = pneg %p158
        %p299 = pneg %p187
        %p300 = pneg %p184
        %s301 = sand.u32 %s174, 1
        %s302 = scalar_lea.sflag [#allocation4], %s301
        %s303 = sand.u32 %s174, 1
        %s304 = smul.addr %s303, 64
        %s305 = scalar_lea.vmem [#allocation3], %s304
        %p306 = pneg %p213
        %p307 = pneg %p210
        %s308 = sand.u32 %s200, 1
        %s309 = scalar_lea.sflag [#allocation6], %s308
        %s310 = sand.u32 %s200, 1
        %s311 = smul.addr %s310, 64
        %s312 = scalar_lea.vmem [#allocation5], %s311
        %p313 = scmp.lt.s32.totalorder %s25, 1
        %s314 = scalar_select %p313, %s25, 1
        %s315 = smul.addr %s314, 2
        %s316 = smul.addr %s315, 8
        %s317 = scalar_lea.vmem %s0, %s316
        %p318 = scmp.lt.s32.totalorder %s25, 1
        %s319 = scalar_select %p318, %s25, 1
        %s320 = smul.addr %s319, 8
        %s321 = smul.addr %s320, 8
        %s322 = scalar_lea.vmem %s1, %s321
        %p323 = scmp.lt.s32.totalorder %s25, 1
        %s324 = scalar_select %p323, %s25, 1
        %s325 = smul.addr %s324, 8
        %s326 = smul.addr %s325, 8
        %s327 = scalar_lea.vmem %s2, %s326
        %v328 = vld [vmem:[%s317] sm:$0xff]
        %v329 = vld [vmem:[%s317 + $0x8] sm:$0xff]
        %v330 = vld [vmem:[%s322] sm:$0xff]
        %v331 = vld [vmem:[%s322 + $0x8] sm:$0xff]
        %v332 = vld [vmem:[%s322 + $0x10] sm:$0xff]
        %v333 = vld [vmem:[%s322 + $0x18] sm:$0xff]
        %v334 = vld [vmem:[%s322 + $0x20] sm:$0xff]
        %v335 = vld [vmem:[%s322 + $0x28] sm:$0xff]
        %v336 = vld [vmem:[%s322 + $0x30] sm:$0xff]
        %v337 = vld [vmem:[%s322 + $0x38] sm:$0xff]
        %v338 = vld [vmem:[%s5] ss:$8 sm:$0x3]
        %340 = vrot.lane.b32.xlu0 %v329, 17
        %v341 = vpop.permute.xlu0 %340
        %344 = vrot.lane.b32.xlu0 %v328, 17
        %v345 = vpop.permute.xlu0 %344
        %vm346 = vcmask 138240
        %v347 = vsel %vm346, %v345, %v341
        %v350 = vsel %vm346, %v341, %v345
        %v352 = vlaneseq
        %v353 = vshrl.u32 %v352, 7
        %v354 = vsub.s32 0, %v353
        %v355 = vrot.slane %v338, %v354
        %v356 = vlaneseq
        %v357 = vshrl.u32 %v356, 7
        %v358 = vsub.s32 1, %v357
        %v359 = vrot.slane %v338, %v358
        %v362 = vmul.f32 %v350, %v355
        %v363 = vmul.f32 %v347, %v359
        %364 = vst [vmem:[#allocation2] sm:$0xff] %v362
        %365 = vst [vmem:[#allocation2 + $0x8] sm:$0xff] %v363
        %370 = vrot.lane.b32.xlu0 %v331, 17
        %v371 = vpop.permute.xlu0 %370
        %372 = vrot.lane.b32.xlu0 %v333, 17
        %v373 = vpop.permute.xlu0 %372
        %374 = vrot.lane.b32.xlu0 %v335, 17
        %v375 = vpop.permute.xlu0 %374
        %376 = vrot.lane.b32.xlu0 %v337, 17
        %v377 = vpop.permute.xlu0 %376
        %386 = vrot.lane.b32.xlu0 %v330, 17
        %v387 = vpop.permute.xlu0 %386
        %388 = vrot.lane.b32.xlu0 %v332, 17
        %v389 = vpop.permute.xlu0 %388
        %390 = vrot.lane.b32.xlu0 %v334, 17
        %v391 = vpop.permute.xlu0 %390
        %392 = vrot.lane.b32.xlu0 %v336, 17
        %v393 = vpop.permute.xlu0 %392
        %v394 = vsel %vm346, %v387, %v371
        %v395 = vsel %vm346, %v389, %v373
        %v396 = vsel %vm346, %v391, %v375
        %v397 = vsel %vm346, %v393, %v377
        %v406 = vsel %vm346, %v371, %v387
        %v407 = vsel %vm346, %v373, %v389
        %v408 = vsel %vm346, %v375, %v391
        %v409 = vsel %vm346, %v377, %v393
        %v410 = vmul.f32 %v406, %v355
        %v411 = vmul.f32 %v394, %v359
        %v412 = vmul.f32 %v407, %v355
        %v413 = vmul.f32 %v395, %v359
        %v414 = vmul.f32 %v408, %v355
        %v415 = vmul.f32 %v396, %v359
        %v416 = vmul.f32 %v409, %v355
        %v417 = vmul.f32 %v397, %v359
        %418 = vst [vmem:[#allocation2 + $0x10] sm:$0xff] %v410
        %419 = vst [vmem:[#allocation2 + $0x18] sm:$0xff] %v411
        %420 = vst [vmem:[#allocation2 + $0x20] sm:$0xff] %v412
        %421 = vst [vmem:[#allocation2 + $0x28] sm:$0xff] %v413
        %422 = vst [vmem:[#allocation2 + $0x30] sm:$0xff] %v414
        %423 = vst [vmem:[#allocation2 + $0x38] sm:$0xff] %v415
        %424 = vst [vmem:[#allocation2 + $0x40] sm:$0xff] %v416
        %425 = vst [vmem:[#allocation2 + $0x48] sm:$0xff] %v417
        %s426 = scalar_lea.vmem %s5, 1
        %v427 = vld [vmem:[%s426] ss:$8 sm:$0x3]
        %428 = vrot.lane.b32.xlu0 %v329, 16
        %v429 = vpop.permute.xlu0 %428
        %431 = vrot.lane.b32.xlu0 %v328, 16
        %v432 = vpop.permute.xlu0 %431
        %vm433 = vcmask 130048
        %v434 = vsel %vm433, %v432, %v429
        %v437 = vsel %vm433, %v429, %v432
        %v439 = vlaneseq
        %v440 = vshrl.u32 %v439, 7
        %v441 = vsub.s32 0, %v440
        %v442 = vrot.slane %v427, %v441
        %v443 = vlaneseq
        %v444 = vshrl.u32 %v443, 7
        %v445 = vsub.s32 1, %v444
        %v446 = vrot.slane %v427, %v445
        %v449 = vmul.f32 %v437, %v442
        %v450 = vmul.f32 %v434, %v446
        %451 = vst [vmem:[#allocation2 + $0x50] sm:$0xff] %v449
        %452 = vst [vmem:[#allocation2 + $0x58] sm:$0xff] %v450
        %453 = vrot.lane.b32.xlu0 %v331, 16
        %v454 = vpop.permute.xlu0 %453
        %455 = vrot.lane.b32.xlu0 %v333, 16
        %v456 = vpop.permute.xlu0 %455
        %457 = vrot.lane.b32.xlu0 %v335, 16
        %v458 = vpop.permute.xlu0 %457
        %459 = vrot.lane.b32.xlu0 %v337, 16
        %v460 = vpop.permute.xlu0 %459
        %465 = vrot.lane.b32.xlu0 %v330, 16
        %v466 = vpop.permute.xlu0 %465
        %467 = vrot.lane.b32.xlu0 %v332, 16
        %v468 = vpop.permute.xlu0 %467
        %469 = vrot.lane.b32.xlu0 %v334, 16
        %v470 = vpop.permute.xlu0 %469
        %471 = vrot.lane.b32.xlu0 %v336, 16
        %v472 = vpop.permute.xlu0 %471
        %v473 = vsel %vm433, %v466, %v454
        %v474 = vsel %vm433, %v468, %v456
        %v475 = vsel %vm433, %v470, %v458
        %v476 = vsel %vm433, %v472, %v460
        %v485 = vsel %vm433, %v454, %v466
        %v486 = vsel %vm433, %v456, %v468
        %v487 = vsel %vm433, %v458, %v470
        %v488 = vsel %vm433, %v460, %v472
        %v489 = vmul.f32 %v485, %v442
        %v490 = vmul.f32 %v473, %v446
        %v491 = vmul.f32 %v486, %v442
        %v492 = vmul.f32 %v474, %v446
        %v493 = vmul.f32 %v487, %v442
        %v494 = vmul.f32 %v475, %v446
        %v495 = vmul.f32 %v488, %v442
        %v496 = vmul.f32 %v476, %v446
        %497 = vst [vmem:[#allocation2 + $0x60] sm:$0xff] %v489
        %498 = vst [vmem:[#allocation2 + $0x68] sm:$0xff] %v490
        %499 = vst [vmem:[#allocation2 + $0x70] sm:$0xff] %v491
        %500 = vst [vmem:[#allocation2 + $0x78] sm:$0xff] %v492
        %501 = vst [vmem:[#allocation2 + $0x80] sm:$0xff] %v493
        %502 = vst [vmem:[#allocation2 + $0x88] sm:$0xff] %v494
        %503 = vst [vmem:[#allocation2 + $0x90] sm:$0xff] %v495
        %504 = vst [vmem:[#allocation2 + $0x98] sm:$0xff] %v496
        %s505 = scalar_lea.vmem %s5, 2
        %v506 = vld [vmem:[%s505] ss:$8 sm:$0x3]
        %507 = vrot.lane.b32.xlu0 %v329, 15
        %v508 = vpop.permute.xlu0 %507
        %510 = vrot.lane.b32.xlu0 %v328, 15
        %v511 = vpop.permute.xlu0 %510
        %vm512 = vcmask 121856
        %v513 = vsel %vm512, %v511, %v508
        %v516 = vsel %vm512, %v508, %v511
        %v518 = vlaneseq
        %v519 = vshrl.u32 %v518, 7
        %v520 = vsub.s32 0, %v519
        %v521 = vrot.slane %v506, %v520
        %v522 = vlaneseq
        %v523 = vshrl.u32 %v522, 7
        %v524 = vsub.s32 1, %v523
        %v525 = vrot.slane %v506, %v524
        %v528 = vmul.f32 %v516, %v521
        %v529 = vmul.f32 %v513, %v525
        %530 = vst [vmem:[#allocation2 + $0xa0] sm:$0xff] %v528
        %531 = vst [vmem:[#allocation2 + $0xa8] sm:$0xff] %v529
        %532 = vrot.lane.b32.xlu0 %v331, 15
        %v533 = vpop.permute.xlu0 %532
        %534 = vrot.lane.b32.xlu0 %v333, 15
        %v535 = vpop.permute.xlu0 %534
        %536 = vrot.lane.b32.xlu0 %v335, 15
        %v537 = vpop.permute.xlu0 %536
        %538 = vrot.lane.b32.xlu0 %v337, 15
        %v539 = vpop.permute.xlu0 %538
        %544 = vrot.lane.b32.xlu0 %v330, 15
        %v545 = vpop.permute.xlu0 %544
        %546 = vrot.lane.b32.xlu0 %v332, 15
        %v547 = vpop.permute.xlu0 %546
        %548 = vrot.lane.b32.xlu0 %v334, 15
        %v549 = vpop.permute.xlu0 %548
        %550 = vrot.lane.b32.xlu0 %v336, 15
        %v551 = vpop.permute.xlu0 %550
        %v552 = vsel %vm512, %v545, %v533
        %v553 = vsel %vm512, %v547, %v535
        %v554 = vsel %vm512, %v549, %v537
        %v555 = vsel %vm512, %v551, %v539
        %v564 = vsel %vm512, %v533, %v545
        %v565 = vsel %vm512, %v535, %v547
        %v566 = vsel %vm512, %v537, %v549
        %v567 = vsel %vm512, %v539, %v551
        %v568 = vmul.f32 %v564, %v521
        %v569 = vmul.f32 %v552, %v525
        %v570 = vmul.f32 %v565, %v521
        %v571 = vmul.f32 %v553, %v525
        %v572 = vmul.f32 %v566, %v521
        %v573 = vmul.f32 %v554, %v525
        %v574 = vmul.f32 %v567, %v521
        %v575 = vmul.f32 %v555, %v525
        %576 = vst [vmem:[#allocation2 + $0xb0] sm:$0xff] %v568
        %577 = vst [vmem:[#allocation2 + $0xb8] sm:$0xff] %v569
        %578 = vst [vmem:[#allocation2 + $0xc0] sm:$0xff] %v570
        %579 = vst [vmem:[#allocation2 + $0xc8] sm:$0xff] %v571
        %580 = vst [vmem:[#allocation2 + $0xd0] sm:$0xff] %v572
        %581 = vst [vmem:[#allocation2 + $0xd8] sm:$0xff] %v573
        %582 = vst [vmem:[#allocation2 + $0xe0] sm:$0xff] %v574
        %583 = vst [vmem:[#allocation2 + $0xe8] sm:$0xff] %v575
        %s584 = scalar_lea.vmem %s5, 3
        %v585 = vld [vmem:[%s584] ss:$8 sm:$0x3]
        %586 = vrot.lane.b32.xlu0 %v329, 1
        %v587 = vpop.permute.xlu0 %586
        %589 = vrot.lane.b32.xlu0 %v328, 1
        %v590 = vpop.permute.xlu0 %589
        %vm591 = vcmask 7168
        %v592 = vsel %vm591, %v590, %v587
        %v595 = vsel %vm591, %v587, %v590
        %v597 = vlaneseq
        %v598 = vshrl.u32 %v597, 7
        %v599 = vsub.s32 0, %v598
        %v600 = vrot.slane %v585, %v599
        %v601 = vlaneseq
        %v602 = vshrl.u32 %v601, 7
        %v603 = vsub.s32 1, %v602
        %v604 = vrot.slane %v585, %v603
        %v607 = vmul.f32 %v595, %v600
        %v608 = vmul.f32 %v592, %v604
        %609 = vst [vmem:[#allocation2 + $0xf0] sm:$0xff] %v607
        %610 = vst [vmem:[#allocation2 + $0xf8] sm:$0xff] %v608
        %611 = vrot.lane.b32.xlu0 %v331, 1
        %v612 = vpop.permute.xlu0 %611
        %613 = vrot.lane.b32.xlu0 %v333, 1
        %v614 = vpop.permute.xlu0 %613
        %615 = vrot.lane.b32.xlu0 %v335, 1
        %v616 = vpop.permute.xlu0 %615
        %617 = vrot.lane.b32.xlu0 %v337, 1
        %v618 = vpop.permute.xlu0 %617
        %623 = vrot.lane.b32.xlu0 %v330, 1
        %v624 = vpop.permute.xlu0 %623
        %625 = vrot.lane.b32.xlu0 %v332, 1
        %v626 = vpop.permute.xlu0 %625
        %627 = vrot.lane.b32.xlu0 %v334, 1
        %v628 = vpop.permute.xlu0 %627
        %629 = vrot.lane.b32.xlu0 %v336, 1
        %v630 = vpop.permute.xlu0 %629
        %v631 = vsel %vm591, %v624, %v612
        %v632 = vsel %vm591, %v626, %v614
        %v633 = vsel %vm591, %v628, %v616
        %v634 = vsel %vm591, %v630, %v618
        %v643 = vsel %vm591, %v612, %v624
        %v644 = vsel %vm591, %v614, %v626
        %v645 = vsel %vm591, %v616, %v628
        %v646 = vsel %vm591, %v618, %v630
        %v647 = vmul.f32 %v643, %v600
        %v648 = vmul.f32 %v631, %v604
        %v649 = vmul.f32 %v644, %v600
        %v650 = vmul.f32 %v632, %v604
        %v651 = vmul.f32 %v645, %v600
        %v652 = vmul.f32 %v633, %v604
        %v653 = vmul.f32 %v646, %v600
        %v654 = vmul.f32 %v634, %v604
        %655 = vst [vmem:[#allocation2 + $0x100] sm:$0xff] %v647
        %656 = vst [vmem:[#allocation2 + $0x108] sm:$0xff] %v648
        %657 = vst [vmem:[#allocation2 + $0x110] sm:$0xff] %v649
        %658 = vst [vmem:[#allocation2 + $0x118] sm:$0xff] %v650
        %659 = vst [vmem:[#allocation2 + $0x120] sm:$0xff] %v651
        %660 = vst [vmem:[#allocation2 + $0x128] sm:$0xff] %v652
        %661 = vst [vmem:[#allocation2 + $0x130] sm:$0xff] %v653
        %662 = vst [vmem:[#allocation2 + $0x138] sm:$0xff] %v654
        %s663 = scalar_lea.vmem %s5, 4
        %v664 = vld [vmem:[%s663] ss:$8 sm:$0x3]
        %v666 = vlaneseq
        %v667 = vshrl.u32 %v666, 7
        %v668 = vsub.s32 0, %v667
        %v669 = vrot.slane %v664, %v668
        %v670 = vlaneseq
        %v671 = vshrl.u32 %v670, 7
        %v672 = vsub.s32 1, %v671
        %v673 = vrot.slane %v664, %v672
        %v676 = vmul.f32 %v328, %v669
        %v677 = vmul.f32 %v329, %v673
        %678 = vst [vmem:[#allocation2 + $0x140] sm:$0xff] %v676
        %679 = vst [vmem:[#allocation2 + $0x148] sm:$0xff] %v677
        %v680 = vmul.f32 %v330, %v669
        %v681 = vmul.f32 %v331, %v673
        %v682 = vmul.f32 %v332, %v669
        %v683 = vmul.f32 %v333, %v673
        %v684 = vmul.f32 %v334, %v669
        %v685 = vmul.f32 %v335, %v673
        %v686 = vmul.f32 %v336, %v669
        %v687 = vmul.f32 %v337, %v673
        %688 = vst [vmem:[#allocation2 + $0x150] sm:$0xff] %v680
        %689 = vst [vmem:[#allocation2 + $0x158] sm:$0xff] %v681
        %690 = vst [vmem:[#allocation2 + $0x160] sm:$0xff] %v682
        %691 = vst [vmem:[#allocation2 + $0x168] sm:$0xff] %v683
        %692 = vst [vmem:[#allocation2 + $0x170] sm:$0xff] %v684
        %693 = vst [vmem:[#allocation2 + $0x178] sm:$0xff] %v685
        %694 = vst [vmem:[#allocation2 + $0x180] sm:$0xff] %v686
        %695 = vst [vmem:[#allocation2 + $0x188] sm:$0xff] %v687
        %s696 = scalar_lea.vmem %s5, 5
        %v697 = vld [vmem:[%s696] ss:$8 sm:$0x3]
        %698 = vrot.lane.b32.xlu0 %v328, 127
        %v699 = vpop.permute.xlu0 %698
        %700 = vrot.lane.b32.xlu0 %v329, 127
        %v701 = vpop.permute.xlu0 %700
        %vm702 = vcmask 1039360
        %v703 = vsel %vm702, %v699, %v701
        %v707 = vsel %vm702, %v701, %v699
        %v709 = vlaneseq
        %v710 = vshrl.u32 %v709, 7
        %v711 = vsub.s32 0, %v710
        %v712 = vrot.slane %v697, %v711
        %v713 = vlaneseq
        %v714 = vshrl.u32 %v713, 7
        %v715 = vsub.s32 1, %v714
        %v716 = vrot.slane %v697, %v715
        %v719 = vmul.f32 %v703, %v712
        %v720 = vmul.f32 %v707, %v716
        %721 = vst [vmem:[#allocation2 + $0x190] sm:$0xff] %v719
        %722 = vst [vmem:[#allocation2 + $0x198] sm:$0xff] %v720
        %723 = vrot.lane.b32.xlu0 %v330, 127
        %v724 = vpop.permute.xlu0 %723
        %725 = vrot.lane.b32.xlu0 %v331, 127
        %v726 = vpop.permute.xlu0 %725
        %727 = vrot.lane.b32.xlu0 %v332, 127
        %v728 = vpop.permute.xlu0 %727
        %729 = vrot.lane.b32.xlu0 %v333, 127
        %v730 = vpop.permute.xlu0 %729
        %731 = vrot.lane.b32.xlu0 %v334, 127
        %v732 = vpop.permute.xlu0 %731
        %733 = vrot.lane.b32.xlu0 %v335, 127
        %v734 = vpop.permute.xlu0 %733
        %735 = vrot.lane.b32.xlu0 %v336, 127
        %v736 = vpop.permute.xlu0 %735
        %737 = vrot.lane.b32.xlu0 %v337, 127
        %v738 = vpop.permute.xlu0 %737
        %v739 = vsel %vm702, %v724, %v726
        %v740 = vsel %vm702, %v728, %v730
        %v741 = vsel %vm702, %v732, %v734
        %v742 = vsel %vm702, %v736, %v738
        %v755 = vsel %vm702, %v726, %v724
        %v756 = vsel %vm702, %v730, %v728
        %v757 = vsel %vm702, %v734, %v732
        %v758 = vsel %vm702, %v738, %v736
        %v759 = vmul.f32 %v739, %v712
        %v760 = vmul.f32 %v755, %v716
        %v761 = vmul.f32 %v740, %v712
        %v762 = vmul.f32 %v756, %v716
        %v763 = vmul.f32 %v741, %v712
        %v764 = vmul.f32 %v757, %v716
        %v765 = vmul.f32 %v742, %v712
        %v766 = vmul.f32 %v758, %v716
        %767 = vst [vmem:[#allocation2 + $0x1a0] sm:$0xff] %v759
        %768 = vst [vmem:[#allocation2 + $0x1a8] sm:$0xff] %v760
        %769 = vst [vmem:[#allocation2 + $0x1b0] sm:$0xff] %v761
        %770 = vst [vmem:[#allocation2 + $0x1b8] sm:$0xff] %v762
        %771 = vst [vmem:[#allocation2 + $0x1c0] sm:$0xff] %v763
        %772 = vst [vmem:[#allocation2 + $0x1c8] sm:$0xff] %v764
        %773 = vst [vmem:[#allocation2 + $0x1d0] sm:$0xff] %v765
        %774 = vst [vmem:[#allocation2 + $0x1d8] sm:$0xff] %v766
        %s775 = scalar_lea.vmem %s5, 6
        %v776 = vld [vmem:[%s775] ss:$8 sm:$0x3]
        %777 = vrot.lane.b32.xlu0 %v328, 113
        %v778 = vpop.permute.xlu0 %777
        %779 = vrot.lane.b32.xlu0 %v329, 113
        %v780 = vpop.permute.xlu0 %779
        %vm781 = vcmask 924672
        %v782 = vsel %vm781, %v778, %v780
        %v786 = vsel %vm781, %v780, %v778
        %v788 = vlaneseq
        %v789 = vshrl.u32 %v788, 7
        %v790 = vsub.s32 0, %v789
        %v791 = vrot.slane %v776, %v790
        %v792 = vlaneseq
        %v793 = vshrl.u32 %v792, 7
        %v794 = vsub.s32 1, %v793
        %v795 = vrot.slane %v776, %v794
        %v798 = vmul.f32 %v782, %v791
        %v799 = vmul.f32 %v786, %v795
        %800 = vst [vmem:[#allocation2 + $0x1e0] sm:$0xff] %v798
        %801 = vst [vmem:[#allocation2 + $0x1e8] sm:$0xff] %v799
        %802 = vrot.lane.b32.xlu0 %v330, 113
        %v803 = vpop.permute.xlu0 %802
        %804 = vrot.lane.b32.xlu0 %v331, 113
        %v805 = vpop.permute.xlu0 %804
        %806 = vrot.lane.b32.xlu0 %v332, 113
        %v807 = vpop.permute.xlu0 %806
        %808 = vrot.lane.b32.xlu0 %v333, 113
        %v809 = vpop.permute.xlu0 %808
        %810 = vrot.lane.b32.xlu0 %v334, 113
        %v811 = vpop.permute.xlu0 %810
        %812 = vrot.lane.b32.xlu0 %v335, 113
        %v813 = vpop.permute.xlu0 %812
        %814 = vrot.lane.b32.xlu0 %v336, 113
        %v815 = vpop.permute.xlu0 %814
        %816 = vrot.lane.b32.xlu0 %v337, 113
        %v817 = vpop.permute.xlu0 %816
        %v818 = vsel %vm781, %v803, %v805
        %v819 = vsel %vm781, %v807, %v809
        %v820 = vsel %vm781, %v811, %v813
        %v821 = vsel %vm781, %v815, %v817
        %v834 = vsel %vm781, %v805, %v803
        %v835 = vsel %vm781, %v809, %v807
        %v836 = vsel %vm781, %v813, %v811
        %v837 = vsel %vm781, %v817, %v815
        %v838 = vmul.f32 %v818, %v791
        %v839 = vmul.f32 %v834, %v795
        %v840 = vmul.f32 %v819, %v791
        %v841 = vmul.f32 %v835, %v795
        %v842 = vmul.f32 %v820, %v791
        %v843 = vmul.f32 %v836, %v795
        %v844 = vmul.f32 %v821, %v791
        %v845 = vmul.f32 %v837, %v795
        %846 = vst [vmem:[#allocation2 + $0x1f0] sm:$0xff] %v838
        %847 = vst [vmem:[#allocation2 + $0x1f8] sm:$0xff] %v839
        %848 = vst [vmem:[#allocation2 + $0x200] sm:$0xff] %v840
        %849 = vst [vmem:[#allocation2 + $0x208] sm:$0xff] %v841
        %850 = vst [vmem:[#allocation2 + $0x210] sm:$0xff] %v842
        %851 = vst [vmem:[#allocation2 + $0x218] sm:$0xff] %v843
        %852 = vst [vmem:[#allocation2 + $0x220] sm:$0xff] %v844
        %853 = vst [vmem:[#allocation2 + $0x228] sm:$0xff] %v845
        %s854 = scalar_lea.vmem %s5, 7
        %v855 = vld [vmem:[%s854] ss:$8 sm:$0x3]
        %856 = vrot.lane.b32.xlu0 %v328, 112
        %v857 = vpop.permute.xlu0 %856
        %858 = vrot.lane.b32.xlu0 %v329, 112
        %v859 = vpop.permute.xlu0 %858
        %vm860 = vcmask 916480
        %v861 = vsel %vm860, %v857, %v859
        %v865 = vsel %vm860, %v859, %v857
        %v867 = vlaneseq
        %v868 = vshrl.u32 %v867, 7
        %v869 = vsub.s32 0, %v868
        %v870 = vrot.slane %v855, %v869
        %v871 = vlaneseq
        %v872 = vshrl.u32 %v871, 7
        %v873 = vsub.s32 1, %v872
        %v874 = vrot.slane %v855, %v873
        %v877 = vmul.f32 %v861, %v870
        %v878 = vmul.f32 %v865, %v874
        %879 = vst [vmem:[#allocation2 + $0x230] sm:$0xff] %v877
        %880 = vst [vmem:[#allocation2 + $0x238] sm:$0xff] %v878
        %881 = vrot.lane.b32.xlu0 %v330, 112
        %v882 = vpop.permute.xlu0 %881
        %883 = vrot.lane.b32.xlu0 %v331, 112
        %v884 = vpop.permute.xlu0 %883
        %885 = vrot.lane.b32.xlu0 %v332, 112
        %v886 = vpop.permute.xlu0 %885
        %887 = vrot.lane.b32.xlu0 %v333, 112
        %v888 = vpop.permute.xlu0 %887
        %889 = vrot.lane.b32.xlu0 %v334, 112
        %v890 = vpop.permute.xlu0 %889
        %891 = vrot.lane.b32.xlu0 %v335, 112
        %v892 = vpop.permute.xlu0 %891
        %893 = vrot.lane.b32.xlu0 %v336, 112
        %v894 = vpop.permute.xlu0 %893
        %895 = vrot.lane.b32.xlu0 %v337, 112
        %v896 = vpop.permute.xlu0 %895
        %v897 = vsel %vm860, %v882, %v884
        %v898 = vsel %vm860, %v886, %v888
        %v899 = vsel %vm860, %v890, %v892
        %v900 = vsel %vm860, %v894, %v896
        %v913 = vsel %vm860, %v884, %v882
        %v914 = vsel %vm860, %v888, %v886
        %v915 = vsel %vm860, %v892, %v890
        %v916 = vsel %vm860, %v896, %v894
        %v917 = vmul.f32 %v897, %v870
        %v918 = vmul.f32 %v913, %v874
        %v919 = vmul.f32 %v898, %v870
        %v920 = vmul.f32 %v914, %v874
        %v921 = vmul.f32 %v899, %v870
        %v922 = vmul.f32 %v915, %v874
        %v923 = vmul.f32 %v900, %v870
        %v924 = vmul.f32 %v916, %v874
        %925 = vst [vmem:[#allocation2 + $0x240] sm:$0xff] %v917
        %926 = vst [vmem:[#allocation2 + $0x248] sm:$0xff] %v918
        %927 = vst [vmem:[#allocation2 + $0x250] sm:$0xff] %v919
        %928 = vst [vmem:[#allocation2 + $0x258] sm:$0xff] %v920
        %929 = vst [vmem:[#allocation2 + $0x260] sm:$0xff] %v921
        %930 = vst [vmem:[#allocation2 + $0x268] sm:$0xff] %v922
        %931 = vst [vmem:[#allocation2 + $0x270] sm:$0xff] %v923
        %932 = vst [vmem:[#allocation2 + $0x278] sm:$0xff] %v924
        %s933 = scalar_lea.vmem %s5, 16
        %v934 = vld [vmem:[%s933] ss:$8 sm:$0x3]
        %935 = vrot.lane.b32.xlu0 %v328, 111
        %v936 = vpop.permute.xlu0 %935
        %937 = vrot.lane.b32.xlu0 %v329, 111
        %v938 = vpop.permute.xlu0 %937
        %vm939 = vcmask 908288
        %v940 = vsel %vm939, %v936, %v938
        %v944 = vsel %vm939, %v938, %v936
        %v946 = vlaneseq
        %v947 = vshrl.u32 %v946, 7
        %v948 = vsub.s32 0, %v947
        %v949 = vrot.slane %v934, %v948
        %v950 = vlaneseq
        %v951 = vshrl.u32 %v950, 7
        %v952 = vsub.s32 1, %v951
        %v953 = vrot.slane %v934, %v952
        %v956 = vmul.f32 %v940, %v949
        %v957 = vmul.f32 %v944, %v953
        %958 = vst [vmem:[#allocation2 + $0x280] sm:$0xff] %v956
        %959 = vst [vmem:[#allocation2 + $0x288] sm:$0xff] %v957
        %960 = vrot.lane.b32.xlu0 %v330, 111
        %v961 = vpop.permute.xlu0 %960
        %962 = vrot.lane.b32.xlu0 %v331, 111
        %v963 = vpop.permute.xlu0 %962
        %964 = vrot.lane.b32.xlu0 %v332, 111
        %v965 = vpop.permute.xlu0 %964
        %966 = vrot.lane.b32.xlu0 %v333, 111
        %v967 = vpop.permute.xlu0 %966
        %968 = vrot.lane.b32.xlu0 %v334, 111
        %v969 = vpop.permute.xlu0 %968
        %970 = vrot.lane.b32.xlu0 %v335, 111
        %v971 = vpop.permute.xlu0 %970
        %972 = vrot.lane.b32.xlu0 %v336, 111
        %v973 = vpop.permute.xlu0 %972
        %974 = vrot.lane.b32.xlu0 %v337, 111
        %v975 = vpop.permute.xlu0 %974
        %v976 = vsel %vm939, %v961, %v963
        %v977 = vsel %vm939, %v965, %v967
        %v978 = vsel %vm939, %v969, %v971
        %v979 = vsel %vm939, %v973, %v975
        %v992 = vsel %vm939, %v963, %v961
        %v993 = vsel %vm939, %v967, %v965
        %v994 = vsel %vm939, %v971, %v969
        %v995 = vsel %vm939, %v975, %v973
        %v996 = vmul.f32 %v976, %v949
        %v997 = vmul.f32 %v992, %v953
        %v998 = vmul.f32 %v977, %v949
        %v999 = vmul.f32 %v993, %v953
        %v1000 = vmul.f32 %v978, %v949
        %v1001 = vmul.f32 %v994, %v953
        %v1002 = vmul.f32 %v979, %v949
        %v1003 = vmul.f32 %v995, %v953
        %1004 = vst [vmem:[#allocation2 + $0x290] sm:$0xff] %v996
        %1005 = vst [vmem:[#allocation2 + $0x298] sm:$0xff] %v997
        %1006 = vst [vmem:[#allocation2 + $0x2a0] sm:$0xff] %v998
        %1007 = vst [vmem:[#allocation2 + $0x2a8] sm:$0xff] %v999
        %1008 = vst [vmem:[#allocation2 + $0x2b0] sm:$0xff] %v1000
        %1009 = vst [vmem:[#allocation2 + $0x2b8] sm:$0xff] %v1001
        %1010 = vst [vmem:[#allocation2 + $0x2c0] sm:$0xff] %v1002
        %1011 = vst [vmem:[#allocation2 + $0x2c8] sm:$0xff] %v1003
        %v1012 = vld [vmem:[%s3] sm:$0xff]
        %v1013 = vld [vmem:[%s3 + $0x8] sm:$0xff]
        %v1014 = vld [vmem:[%s3 + $0x10] sm:$0xff]
        %v1015 = vld [vmem:[%s3 + $0x18] sm:$0xff]
        %v1016 = vld [vmem:[%s3 + $0x20] sm:$0xff]
        %v1017 = vld [vmem:[%s3 + $0x28] sm:$0xff]
        %v1018 = vld [vmem:[%s3 + $0x30] sm:$0xff]
        %v1019 = vld [vmem:[%s3 + $0x38] sm:$0xff]
        %v1020 = vld [vmem:[%s3 + $0x40] sm:$0xff]
        %v1021 = vld [vmem:[%s3 + $0x48] sm:$0xff]
        %v1022 = vld [vmem:[%s3 + $0x50] sm:$0xff]
        %v1023 = vld [vmem:[%s3 + $0x58] sm:$0xff]
        %v1024 = vld [vmem:[%s3 + $0x60] sm:$0xff]
        %v1025 = vld [vmem:[%s3 + $0x68] sm:$0xff]
        %v1026 = vld [vmem:[%s3 + $0x70] sm:$0xff]
        %v1027 = vld [vmem:[%s3 + $0x78] sm:$0xff]
        %v1028 = vld [vmem:[%s3 + $0x80] sm:$0xff]
        %v1029 = vld [vmem:[%s3 + $0x88] sm:$0xff]
        %v1030 = vld [vmem:[%s3 + $0x90] sm:$0xff]
        %v1031 = vld [vmem:[%s3 + $0x98] sm:$0xff]
        %v1032 = vld [vmem:[%s3 + $0xa0] sm:$0xff]
        %v1033 = vld [vmem:[%s3 + $0xa8] sm:$0xff]
        %v1034 = vld [vmem:[%s3 + $0xb0] sm:$0xff]
        %v1035 = vld [vmem:[%s3 + $0xb8] sm:$0xff]
        %v1036 = vld [vmem:[%s3 + $0xc0] sm:$0xff]
        %v1037 = vld [vmem:[%s3 + $0xc8] sm:$0xff]
        %v1038 = vld [vmem:[%s3 + $0xd0] sm:$0xff]
        %v1039 = vld [vmem:[%s3 + $0xd8] sm:$0xff]
        %v1040 = vld [vmem:[%s3 + $0xe0] sm:$0xff]
        %v1041 = vld [vmem:[%s3 + $0xe8] sm:$0xff]
        %v1042 = vld [vmem:[%s3 + $0xf0] sm:$0xff]
        %v1043 = vld [vmem:[%s3 + $0xf8] sm:$0xff]
        %v1044 = vld [vmem:[%s3 + $0x100] sm:$0xff]
        %v1045 = vld [vmem:[%s3 + $0x108] sm:$0xff]
        %v1046 = vld [vmem:[%s3 + $0x110] sm:$0xff]
        %v1047 = vld [vmem:[%s3 + $0x118] sm:$0xff]
        %v1048 = vld [vmem:[%s3 + $0x120] sm:$0xff]
        %v1049 = vld [vmem:[%s3 + $0x128] sm:$0xff]
        %v1050 = vld [vmem:[%s3 + $0x130] sm:$0xff]
        %v1051 = vld [vmem:[%s3 + $0x138] sm:$0xff]
        %v1052 = vld [vmem:[%s3 + $0x140] sm:$0xff]
        %v1053 = vld [vmem:[%s3 + $0x148] sm:$0xff]
        %v1054 = vld [vmem:[%s3 + $0x150] sm:$0xff]
        %v1055 = vld [vmem:[%s3 + $0x158] sm:$0xff]
        %v1056 = vld [vmem:[%s3 + $0x160] sm:$0xff]
        %v1057 = vld [vmem:[%s3 + $0x168] sm:$0xff]
        %v1058 = vld [vmem:[%s3 + $0x170] sm:$0xff]
        %v1059 = vld [vmem:[%s3 + $0x178] sm:$0xff]
        %v1060 = vld [vmem:[#allocation2] sm:$0xff]
        %v1061 = vld [vmem:[#allocation2 + $0x8] sm:$0xff]
        %v1062 = vld [vmem:[#allocation2 + $0x10] sm:$0xff]
        %v1063 = vld [vmem:[#allocation2 + $0x18] sm:$0xff]
        %v1064 = vld [vmem:[#allocation2 + $0x20] sm:$0xff]
        %v1065 = vld [vmem:[#allocation2 + $0x28] sm:$0xff]
        %v1066 = vld [vmem:[#allocation2 + $0x30] sm:$0xff]
        %v1067 = vld [vmem:[#allocation2 + $0x38] sm:$0xff]
        %v1068 = vld [vmem:[#allocation2 + $0x40] sm:$0xff]
        %v1069 = vld [vmem:[#allocation2 + $0x48] sm:$0xff]
        %v1070 = vld [vmem:[#allocation2 + $0x50] sm:$0xff]
        %v1071 = vld [vmem:[#allocation2 + $0x58] sm:$0xff]
        %v1072 = vld [vmem:[#allocation2 + $0x60] sm:$0xff]
        %v1073 = vld [vmem:[#allocation2 + $0x68] sm:$0xff]
        %v1074 = vld [vmem:[#allocation2 + $0x70] sm:$0xff]
        %v1075 = vld [vmem:[#allocation2 + $0x78] sm:$0xff]
        %v1076 = vld [vmem:[#allocation2 + $0x80] sm:$0xff]
        %v1077 = vld [vmem:[#allocation2 + $0x88] sm:$0xff]
        %v1078 = vld [vmem:[#allocation2 + $0x90] sm:$0xff]
        %v1079 = vld [vmem:[#allocation2 + $0x98] sm:$0xff]
        %v1080 = vld [vmem:[#allocation2 + $0xa0] sm:$0xff]
        %v1081 = vld [vmem:[#allocation2 + $0xa8] sm:$0xff]
        %v1082 = vld [vmem:[#allocation2 + $0xb0] sm:$0xff]
        %v1083 = vld [vmem:[#allocation2 + $0xb8] sm:$0xff]
        %v1084 = vld [vmem:[#allocation2 + $0xc0] sm:$0xff]
        %v1085 = vld [vmem:[#allocation2 + $0xc8] sm:$0xff]
        %v1086 = vld [vmem:[#allocation2 + $0xd0] sm:$0xff]
        %v1087 = vld [vmem:[#allocation2 + $0xd8] sm:$0xff]
        %v1088 = vld [vmem:[#allocation2 + $0xe0] sm:$0xff]
        %v1089 = vld [vmem:[#allocation2 + $0xe8] sm:$0xff]
        %v1090 = vld [vmem:[#allocation2 + $0xf0] sm:$0xff]
        %v1091 = vld [vmem:[#allocation2 + $0xf8] sm:$0xff]
        %v1092 = vld [vmem:[#allocation2 + $0x100] sm:$0xff]
        %v1093 = vld [vmem:[#allocation2 + $0x108] sm:$0xff]
        %v1094 = vld [vmem:[#allocation2 + $0x110] sm:$0xff]
        %v1095 = vld [vmem:[#allocation2 + $0x118] sm:$0xff]
        %v1096 = vld [vmem:[#allocation2 + $0x120] sm:$0xff]
        %v1097 = vld [vmem:[#allocation2 + $0x128] sm:$0xff]
        %v1098 = vld [vmem:[#allocation2 + $0x130] sm:$0xff]
        %v1099 = vld [vmem:[#allocation2 + $0x138] sm:$0xff]
        %v1100 = vld [vmem:[#allocation2 + $0x140] sm:$0xff]
        %v1101 = vld [vmem:[#allocation2 + $0x148] sm:$0xff]
        %v1102 = vld [vmem:[#allocation2 + $0x150] sm:$0xff]
        %v1103 = vld [vmem:[#allocation2 + $0x158] sm:$0xff]
        %v1104 = vld [vmem:[#allocation2 + $0x160] sm:$0xff]
        %v1105 = vld [vmem:[#allocation2 + $0x168] sm:$0xff]
        %v1106 = vld [vmem:[#allocation2 + $0x170] sm:$0xff]
        %v1107 = vld [vmem:[#allocation2 + $0x178] sm:$0xff]
        %v1108 = vld [vmem:[#allocation2 + $0x180] sm:$0xff]
        %v1109 = vld [vmem:[#allocation2 + $0x188] sm:$0xff]
        %v1110 = vld [vmem:[#allocation2 + $0x190] sm:$0xff]
        %v1111 = vld [vmem:[#allocation2 + $0x198] sm:$0xff]
        %v1112 = vld [vmem:[#allocation2 + $0x1a0] sm:$0xff]
        %v1113 = vld [vmem:[#allocation2 + $0x1a8] sm:$0xff]
        %v1114 = vld [vmem:[#allocation2 + $0x1b0] sm:$0xff]
        %v1115 = vld [vmem:[#allocation2 + $0x1b8] sm:$0xff]
        %v1116 = vld [vmem:[#allocation2 + $0x1c0] sm:$0xff]
        %v1117 = vld [vmem:[#allocation2 + $0x1c8] sm:$0xff]
        %v1118 = vld [vmem:[#allocation2 + $0x1d0] sm:$0xff]
        %v1119 = vld [vmem:[#allocation2 + $0x1d8] sm:$0xff]
        %v1120 = vld [vmem:[#allocation2 + $0x1e0] sm:$0xff]
        %v1121 = vld [vmem:[#allocation2 + $0x1e8] sm:$0xff]
        %v1122 = vld [vmem:[#allocation2 + $0x1f0] sm:$0xff]
        %v1123 = vld [vmem:[#allocation2 + $0x1f8] sm:$0xff]
        %v1124 = vld [vmem:[#allocation2 + $0x200] sm:$0xff]
        %v1125 = vld [vmem:[#allocation2 + $0x208] sm:$0xff]
        %v1126 = vld [vmem:[#allocation2 + $0x210] sm:$0xff]
        %v1127 = vld [vmem:[#allocation2 + $0x218] sm:$0xff]
        %v1128 = vld [vmem:[#allocation2 + $0x220] sm:$0xff]
        %v1129 = vld [vmem:[#allocation2 + $0x228] sm:$0xff]
        %v1130 = vld [vmem:[#allocation2 + $0x230] sm:$0xff]
        %v1131 = vld [vmem:[#allocation2 + $0x238] sm:$0xff]
        %v1132 = vld [vmem:[#allocation2 + $0x240] sm:$0xff]
        %v1133 = vld [vmem:[#allocation2 + $0x248] sm:$0xff]
        %v1134 = vld [vmem:[#allocation2 + $0x250] sm:$0xff]
        %v1135 = vld [vmem:[#allocation2 + $0x258] sm:$0xff]
        %v1136 = vld [vmem:[#allocation2 + $0x260] sm:$0xff]
        %v1137 = vld [vmem:[#allocation2 + $0x268] sm:$0xff]
        %v1138 = vld [vmem:[#allocation2 + $0x270] sm:$0xff]
        %v1139 = vld [vmem:[#allocation2 + $0x278] sm:$0xff]
        %v1140 = vld [vmem:[#allocation2 + $0x280] sm:$0xff]
        %v1141 = vld [vmem:[#allocation2 + $0x288] sm:$0xff]
        %v1142 = vld [vmem:[#allocation2 + $0x290] sm:$0xff]
        %v1143 = vld [vmem:[#allocation2 + $0x298] sm:$0xff]
        %v1144 = vld [vmem:[#allocation2 + $0x2a0] sm:$0xff]
        %v1145 = vld [vmem:[#allocation2 + $0x2a8] sm:$0xff]
        %v1146 = vld [vmem:[#allocation2 + $0x2b0] sm:$0xff]
        %v1147 = vld [vmem:[#allocation2 + $0x2b8] sm:$0xff]
        %v1148 = vld [vmem:[#allocation2 + $0x2c0] sm:$0xff]
        %v1149 = vld [vmem:[#allocation2 + $0x2c8] sm:$0xff]
        %v1150 = vld [vmem:[%s4] sm:$0xff]
        %v1151 = vld [vmem:[%s4 + $0x8] sm:$0xff]
        %v1152 = vld [vmem:[%s4 + $0x10] sm:$0xff]
        %v1153 = vld [vmem:[%s4 + $0x18] sm:$0xff]
        %v1154 = vld [vmem:[%s4 + $0x20] sm:$0xff]
        %v1155 = vld [vmem:[%s4 + $0x28] sm:$0xff]
        %v1156 = vld [vmem:[%s4 + $0x30] sm:$0xff]
        %v1157 = vld [vmem:[%s4 + $0x38] sm:$0xff]
        %v1158 = vld [vmem:[%s4 + $0x40] sm:$0xff]
        %v1159 = vld [vmem:[%s4 + $0x48] sm:$0xff]
        %v1160 = vld [vmem:[%s4 + $0x50] sm:$0xff]
        %v1161 = vld [vmem:[%s4 + $0x58] sm:$0xff]
        %v1162 = vld [vmem:[%s4 + $0x60] sm:$0xff]
        %v1163 = vld [vmem:[%s4 + $0x68] sm:$0xff]
        %v1164 = vld [vmem:[%s4 + $0x70] sm:$0xff]
        %v1165 = vld [vmem:[%s4 + $0x78] sm:$0xff]
        %1167 = vset.pattern.permute.xlu0 0
        %1168 = vperm.xlu0 %1167, %v1150
        %v1169 = vpop.permute.xlu0 %1168
        %1172 = vset.pattern.permute.xlu0 0
        %1173 = vperm.xlu0 %1172, %v1151
        %v1174 = vpop.permute.xlu0 %1173
        %1177 = vset.pattern.permute.xlu0 0
        %1178 = vperm.xlu0 %1177, %v1152
        %v1179 = vpop.permute.xlu0 %1178
        %1182 = vset.pattern.permute.xlu0 0
        %1183 = vperm.xlu0 %1182, %v1153
        %v1184 = vpop.permute.xlu0 %1183
        %1187 = vset.pattern.permute.xlu0 0
        %1188 = vperm.xlu0 %1187, %v1154
        %v1189 = vpop.permute.xlu0 %1188
        %1192 = vset.pattern.permute.xlu0 0
        %1193 = vperm.xlu0 %1192, %v1155
        %v1194 = vpop.permute.xlu0 %1193
        %1197 = vset.pattern.permute.xlu0 0
        %1198 = vperm.xlu0 %1197, %v1156
        %v1199 = vpop.permute.xlu0 %1198
        %1202 = vset.pattern.permute.xlu0 0
        %1203 = vperm.xlu0 %1202, %v1157
        %v1204 = vpop.permute.xlu0 %1203
        %1207 = vset.pattern.permute.xlu0 0
        %1208 = vperm.xlu0 %1207, %v1158
        %v1209 = vpop.permute.xlu0 %1208
        %1212 = vset.pattern.permute.xlu0 0
        %1213 = vperm.xlu0 %1212, %v1159
        %v1214 = vpop.permute.xlu0 %1213
        %1217 = vset.pattern.permute.xlu0 0
        %1218 = vperm.xlu0 %1217, %v1160
        %v1219 = vpop.permute.xlu0 %1218
        %1222 = vset.pattern.permute.xlu0 0
        %1223 = vperm.xlu0 %1222, %v1161
        %v1224 = vpop.permute.xlu0 %1223
        %1227 = vset.pattern.permute.xlu0 0
        %1228 = vperm.xlu0 %1227, %v1162
        %v1229 = vpop.permute.xlu0 %1228
        %1232 = vset.pattern.permute.xlu0 0
        %1233 = vperm.xlu0 %1232, %v1163
        %v1234 = vpop.permute.xlu0 %1233
        %1237 = vset.pattern.permute.xlu0 0
        %1238 = vperm.xlu0 %1237, %v1164
        %v1239 = vpop.permute.xlu0 %1238
        %1242 = vset.pattern.permute.xlu0 0
        %1243 = vperm.xlu0 %1242, %v1165
        %v1244 = vpop.permute.xlu0 %1243
        %vm1246 = vcmask 850944
        %v1248 = vsel %vm1246, %v1014, 0
        %v1251 = vsel %vm1246, %v1017, 0
        %v1254 = vsel %vm1246, %v1020, 0
        %v1257 = vsel %vm1246, %v1023, 0
        %v1260 = vsel %vm1246, %v1026, 0
        %v1263 = vsel %vm1246, %v1029, 0
        %v1266 = vsel %vm1246, %v1032, 0
        %v1269 = vsel %vm1246, %v1035, 0
        %v1272 = vsel %vm1246, %v1038, 0
        %v1275 = vsel %vm1246, %v1041, 0
        %v1278 = vsel %vm1246, %v1044, 0
        %v1281 = vsel %vm1246, %v1047, 0
        %v1284 = vsel %vm1246, %v1050, 0
        %v1287 = vsel %vm1246, %v1053, 0
        %v1290 = vsel %vm1246, %v1056, 0
        %v1293 = vsel %vm1246, %v1059, 0
        %1295 = vmatprep.subr.mxu0 %v1061
        %1296 = vmatpush1.msra.mxu0 %v1060
        %1297 = vmatprep.subr.mxu0 %v1063
        %1298 = vmatpush1.msra.mxu0 %v1062
        %1299 = vmatprep.subr.mxu0 %v1065
        %1300 = vmatpush1.msra.mxu0 %v1064
        %1301 = vmatprep.subr.mxu0 %v1067
        %1302 = vmatpush1.msra.mxu0 %v1066
        %1303 = vmatprep.subr.mxu0 %v1069
        %1304 = vmatpush1.msra.mxu0 %v1068
        %1305 = vmatprep.subr.mxu0 %v1071
        %1306 = vmatpush1.msra.mxu0 %v1070
        %1307 = vmatprep.subr.mxu0 %v1073
        %1308 = vmatpush1.msra.mxu0 %v1072
        %1309 = vmatprep.subr.mxu0 %v1075
        %1310 = vmatpush1.msra.mxu0 %v1074
        %1311 = vmatprep.subr.mxu0 %v1077
        %1312 = vmatpush1.msra.mxu0 %v1076
        %1313 = vmatprep.subr.mxu0 %v1079
        %1314 = vmatpush1.msra.mxu0 %v1078
        %1315 = vmatprep.subr.mxu0 %v1081
        %1316 = vmatpush1.msra.mxu0 %v1080
        %1317 = vmatprep.subr.mxu0 %v1083
        %1318 = vmatpush1.msra.mxu0 %v1082
        %1319 = vmatprep.subr.mxu0 %v1085
        %1320 = vmatpush1.msra.mxu0 %v1084
        %1321 = vmatprep.subr.mxu0 %v1087
        %1322 = vmatpush1.msra.mxu0 %v1086
        %1323 = vmatprep.subr.mxu0 %v1089
        %1324 = vmatpush1.msra.mxu0 %v1088
        %1325 = vmatprep.subr.mxu0 %v1091
        %1326 = vmatpush1.msra.mxu0 %v1090
        %1327 = vmatprep.subr.mxu0 %v1093
        %1328 = vmatpush1.msra.mxu0 %v1092
        %1329 = vmatprep.subr.mxu0 %v1095
        %1330 = vmatpush1.msra.mxu0 %v1094
        %1331 = vmatprep.subr.mxu0 %v1097
        %1332 = vmatpush1.msra.mxu0 %v1096
        %1333 = vmatprep.subr.mxu0 %v1099
        %1334 = vmatpush1.msra.mxu0 %v1098
        %1335 = vmatprep.subr.mxu0 %v1101
        %1336 = vmatpush1.msra.mxu0 %v1100
        %1337 = vmatprep.subr.mxu0 %v1103
        %1338 = vmatpush1.msra.mxu0 %v1102
        %1339 = vmatprep.subr.mxu0 %v1105
        %1340 = vmatpush1.msra.mxu0 %v1104
        %1341 = vmatprep.subr.mxu0 %v1107
        %1342 = vmatpush1.msra.mxu0 %v1106
        %1343 = vmatprep.subr.mxu0 %v1109
        %1344 = vmatpush1.msra.mxu0 %v1108
        %1345 = vmatprep.subr.mxu0 %v1111
        %1346 = vmatpush1.msra.mxu0 %v1110
        %1347 = vmatprep.subr.mxu0 %v1113
        %1348 = vmatpush1.msra.mxu0 %v1112
        %1349 = vmatprep.subr.mxu0 %v1115
        %1350 = vmatpush1.msra.mxu0 %v1114
        %1351 = vmatprep.subr.mxu0 %v1117
        %1352 = vmatpush1.msra.mxu0 %v1116
        %1353 = vmatprep.subr.mxu0 %v1119
        %1354 = vmatpush1.msra.mxu0 %v1118
        %1355 = vmatprep.subr.mxu0 %v1121
        %1356 = vmatpush1.msra.mxu0 %v1120
        %1357 = vmatprep.subr.mxu0 %v1123
        %1358 = vmatpush1.msra.mxu0 %v1122
        %1359 = vmatprep.mubr.f32.mxu0 %v1013
        %1360 = vmatmul.mubr.f32.gmra.mrb[0].mxu0 %v1012
        %v1361 = vpop.f32.mrb[0].mxu0
        %v1362 = vadd.f32 %v1169, %v1361
        %v1363 = vpop.f32.mrb[0].mxu0
        %v1364 = vadd.f32 %v1169, %v1363
        %1365 = vmatprep.mubr.f32.mxu0 %v1016
        %1366 = vmatmul.mubr.f32.gmra.mrb[0].mxu0 %v1015
        %v1367 = vpop.f32.mrb[0].mxu0
        %v1368 = vadd.f32 %v1174, %v1367
        %v1369 = vpop.f32.mrb[0].mxu0
        %v1370 = vadd.f32 %v1174, %v1369
        %1371 = vmatprep.mubr.f32.mxu0 %v1019
        %1372 = vmatmul.mubr.f32.gmra.mrb[0].mxu0 %v1018
        %v1373 = vpop.f32.mrb[0].mxu0
        %v1374 = vadd.f32 %v1179, %v1373
        %v1375 = vpop.f32.mrb[0].mxu0
        %v1376 = vadd.f32 %v1179, %v1375
        %1377 = vmatprep.mubr.f32.mxu0 %v1022
        %1378 = vmatmul.mubr.f32.gmra.mrb[0].mxu0 %v1021
        %v1379 = vpop.f32.mrb[0].mxu0
        %v1380 = vadd.f32 %v1184, %v1379
        %v1381 = vpop.f32.mrb[0].mxu0
        %v1382 = vadd.f32 %v1184, %v1381
        %1383 = vmatprep.mubr.f32.mxu0 %v1025
        %1384 = vmatmul.mubr.f32.gmra.mrb[0].mxu0 %v1024
        %v1385 = vpop.f32.mrb[0].mxu0
        %v1386 = vadd.f32 %v1189, %v1385
        %v1387 = vpop.f32.mrb[0].mxu0
        %v1388 = vadd.f32 %v1189, %v1387
        %1389 = vmatprep.mubr.f32.mxu0 %v1028
        %1390 = vmatmul.mubr.f32.gmra.mrb[0].mxu0 %v1027
        %v1391 = vpop.f32.mrb[0].mxu0
        %v1392 = vadd.f32 %v1194, %v1391
        %v1393 = vpop.f32.mrb[0].mxu0
        %v1394 = vadd.f32 %v1194, %v1393
        %1395 = vmatprep.mubr.f32.mxu0 %v1031
        %1396 = vmatmul.mubr.f32.gmra.mrb[0].mxu0 %v1030
        %v1397 = vpop.f32.mrb[0].mxu0
        %v1398 = vadd.f32 %v1199, %v1397
        %v1399 = vpop.f32.mrb[0].mxu0
        %v1400 = vadd.f32 %v1199, %v1399
        %1401 = vmatprep.mubr.f32.mxu0 %v1034
        %1402 = vmatmul.mubr.f32.gmra.mrb[0].mxu0 %v1033
        %v1403 = vpop.f32.mrb[0].mxu0
        %v1404 = vadd.f32 %v1204, %v1403
        %v1405 = vpop.f32.mrb[0].mxu0
        %v1406 = vadd.f32 %v1204, %v1405
        %1407 = vmatprep.mubr.f32.mxu0 %v1037
        %1408 = vmatmul.mubr.f32.gmra.mrb[0].mxu0 %v1036
        %v1409 = vpop.f32.mrb[0].mxu0
        %v1410 = vadd.f32 %v1209, %v1409
        %v1411 = vpop.f32.mrb[0].mxu0
        %v1412 = vadd.f32 %v1209, %v1411
        %1413 = vmatprep.mubr.f32.mxu0 %v1040
        %1414 = vmatmul.mubr.f32.gmra.mrb[0].mxu0 %v1039
        %v1415 = vpop.f32.mrb[0].mxu0
        %v1416 = vadd.f32 %v1214, %v1415
        %v1417 = vpop.f32.mrb[0].mxu0
        %v1418 = vadd.f32 %v1214, %v1417
        %1419 = vmatprep.mubr.f32.mxu0 %v1043
        %1420 = vmatmul.mubr.f32.gmra.mrb[0].mxu0 %v1042
        %v1421 = vpop.f32.mrb[0].mxu0
        %v1422 = vadd.f32 %v1219, %v1421
        %v1423 = vpop.f32.mrb[0].mxu0
        %v1424 = vadd.f32 %v1219, %v1423
        %1425 = vmatprep.mubr.f32.mxu0 %v1046
        %1426 = vmatmul.mubr.f32.gmra.mrb[0].mxu0 %v1045
        %v1427 = vpop.f32.mrb[0].mxu0
        %v1428 = vadd.f32 %v1224, %v1427
        %v1429 = vpop.f32.mrb[0].mxu0
        %v1430 = vadd.f32 %v1224, %v1429
        %1431 = vmatprep.mubr.f32.mxu0 %v1049
        %1432 = vmatmul.mubr.f32.gmra.mrb[0].mxu0 %v1048
        %v1433 = vpop.f32.mrb[0].mxu0
        %v1434 = vadd.f32 %v1229, %v1433
        %v1435 = vpop.f32.mrb[0].mxu0
        %v1436 = vadd.f32 %v1229, %v1435
        %1437 = vmatprep.mubr.f32.mxu0 %v1052
        %1438 = vmatmul.mubr.f32.gmra.mrb[0].mxu0 %v1051
        %v1439 = vpop.f32.mrb[0].mxu0
        %v1440 = vadd.f32 %v1234, %v1439
        %v1441 = vpop.f32.mrb[0].mxu0
        %v1442 = vadd.f32 %v1234, %v1441
        %1443 = vmatprep.mubr.f32.mxu0 %v1055
        %1444 = vmatmul.mubr.f32.gmra.mrb[0].mxu0 %v1054
        %v1445 = vpop.f32.mrb[0].mxu0
        %v1446 = vadd.f32 %v1239, %v1445
        %v1447 = vpop.f32.mrb[0].mxu0
        %v1448 = vadd.f32 %v1239, %v1447
        %1449 = vmatprep.mubr.f32.mxu0 %v1058
        %1450 = vmatmul.mubr.f32.gmra.mrb[0].mxu0 %v1057
        %v1451 = vpop.f32.mrb[0].mxu0
        %v1452 = vadd.f32 %v1244, %v1451
        %v1453 = vpop.f32.mrb[0].mxu0
        %v1454 = vadd.f32 %v1244, %v1453
        %1455 = vdwg.mxu0
        %1456 = vmatprep.subr.mxu0 %v1125
        %1457 = vmatpush1.msra.mxu0 %v1124
        %1458 = vmatprep.subr.mxu0 %v1127
        %1459 = vmatpush1.msra.mxu0 %v1126
        %1460 = vmatprep.subr.mxu0 %v1129
        %1461 = vmatpush1.msra.mxu0 %v1128
        %1462 = vmatprep.subr.mxu0 %v1131
        %1463 = vmatpush1.msra.mxu0 %v1130
        %1464 = vmatprep.subr.mxu0 %v1133
        %1465 = vmatpush1.msra.mxu0 %v1132
        %1466 = vmatprep.subr.mxu0 %v1135
        %1467 = vmatpush1.msra.mxu0 %v1134
        %1468 = vmatprep.subr.mxu0 %v1137
        %1469 = vmatpush1.msra.mxu0 %v1136
        %1470 = vmatprep.subr.mxu0 %v1139
        %1471 = vmatpush1.msra.mxu0 %v1138
        %1472 = vmatprep.subr.mxu0 %v1141
        %1473 = vmatpush1.msra.mxu0 %v1140
        %1474 = vmatprep.subr.mxu0 %v1143
        %1475 = vmatpush1.msra.mxu0 %v1142
        %1476 = vmatprep.subr.mxu0 %v1145
        %1477 = vmatpush1.msra.mxu0 %v1144
        %1478 = vmatprep.subr.mxu0 %v1147
        %1479 = vmatpush1.msra.mxu0 %v1146
        %1480 = vmatprep.subr.mxu0 %v1149
        %1481 = vmatpush1.msra.mxu0 %v1148
        %1482 = vmatprep.subr.mxu0 0.0
        %1483 = vmatpush1.msra.mxu0 0.0
        %1484 = vmatprep.subr.mxu0 0.0
        %1485 = vmatpush1.msra.mxu0 0.0
        %1486 = vmatprep.subr.mxu0 0.0
        %1487 = vmatpush1.msra.mxu0 0.0
        %1488 = vmatprep.subr.mxu0 0.0
        %1489 = vmatpush1.msra.mxu0 0.0
        %1490 = vmatprep.subr.mxu0 0.0
        %1491 = vmatpush1.msra.mxu0 0.0
        %1492 = vmatprep.subr.mxu0 0.0
        %1493 = vmatpush1.msra.mxu0 0.0
        %1494 = vmatprep.subr.mxu0 0.0
        %1495 = vmatpush1.msra.mxu0 0.0
        %1496 = vmatprep.subr.mxu0 0.0
        %1497 = vmatpush1.msra.mxu0 0.0
        %1498 = vmatprep.subr.mxu0 0.0
        %1499 = vmatpush1.msra.mxu0 0.0
        %1500 = vmatprep.subr.mxu0 0.0
        %1501 = vmatpush1.msra.mxu0 0.0
        %1502 = vmatprep.subr.mxu0 0.0
        %1503 = vmatpush1.msra.mxu0 0.0
        %1504 = vmatprep.subr.mxu0 0.0
        %1505 = vmatpush1.msra.mxu0 0.0
        %1506 = vmatprep.subr.mxu0 0.0
        %1507 = vmatpush1.msra.mxu0 0.0
        %1508 = vmatprep.subr.mxu0 0.0
        %1509 = vmatpush1.msra.mxu0 0.0
        %1510 = vmatprep.subr.mxu0 0.0
        %1511 = vmatpush1.msra.mxu0 0.0
        %1512 = vmatprep.subr.mxu0 0.0
        %1513 = vmatpush1.msra.mxu0 0.0
        %1514 = vmatprep.subr.mxu0 0.0
        %1515 = vmatpush1.msra.mxu0 0.0
        %1516 = vmatprep.subr.mxu0 0.0
        %1517 = vmatpush1.msra.mxu0 0.0
        %1518 = vmatprep.subr.mxu0 0.0
        %1519 = vmatpush1.msra.mxu0 0.0
        %1520 = vmatprep.mubr.f32.mxu0 0.0
        %1521 = vmatmul.mubr.f32.gmra.mrb[0].mxu0 %v1248
        %v1522 = vpop.f32.mrb[0].mxu0
        %v1523 = vadd.f32 %v1362, %v1522
        %v1524 = vpop.f32.mrb[0].mxu0
        %v1525 = vadd.f32 %v1364, %v1524
        %1526 = vmatprep.mubr.f32.mxu0 0.0
        %1527 = vmatmul.mubr.f32.gmra.mrb[0].mxu0 %v1251
        %v1528 = vpop.f32.mrb[0].mxu0
        %v1529 = vadd.f32 %v1368, %v1528
        %v1530 = vpop.f32.mrb[0].mxu0
        %v1531 = vadd.f32 %v1370, %v1530
        %1532 = vmatprep.mubr.f32.mxu0 0.0
        %1533 = vmatmul.mubr.f32.gmra.mrb[0].mxu0 %v1254
        %v1534 = vpop.f32.mrb[0].mxu0
        %v1535 = vadd.f32 %v1374, %v1534
        %v1536 = vpop.f32.mrb[0].mxu0
        %v1537 = vadd.f32 %v1376, %v1536
        %1538 = vmatprep.mubr.f32.mxu0 0.0
        %1539 = vmatmul.mubr.f32.gmra.mrb[0].mxu0 %v1257
        %v1540 = vpop.f32.mrb[0].mxu0
        %v1541 = vadd.f32 %v1380, %v1540
        %v1542 = vpop.f32.mrb[0].mxu0
        %v1543 = vadd.f32 %v1382, %v1542
        %1544 = vmatprep.mubr.f32.mxu0 0.0
        %1545 = vmatmul.mubr.f32.gmra.mrb[0].mxu0 %v1260
        %v1546 = vpop.f32.mrb[0].mxu0
        %v1547 = vadd.f32 %v1386, %v1546
        %v1548 = vpop.f32.mrb[0].mxu0
        %v1549 = vadd.f32 %v1388, %v1548
        %1550 = vmatprep.mubr.f32.mxu0 0.0
        %1551 = vmatmul.mubr.f32.gmra.mrb[0].mxu0 %v1263
        %v1552 = vpop.f32.mrb[0].mxu0
        %v1553 = vadd.f32 %v1392, %v1552
        %v1554 = vpop.f32.mrb[0].mxu0
        %v1555 = vadd.f32 %v1394, %v1554
        %1556 = vmatprep.mubr.f32.mxu0 0.0
        %1557 = vmatmul.mubr.f32.gmra.mrb[0].mxu0 %v1266
        %v1558 = vpop.f32.mrb[0].mxu0
        %v1559 = vadd.f32 %v1398, %v1558
        %v1560 = vpop.f32.mrb[0].mxu0
        %v1561 = vadd.f32 %v1400, %v1560
        %1562 = vmatprep.mubr.f32.mxu0 0.0
        %1563 = vmatmul.mubr.f32.gmra.mrb[0].mxu0 %v1269
        %v1564 = vpop.f32.mrb[0].mxu0
        %v1565 = vadd.f32 %v1404, %v1564
        %v1566 = vpop.f32.mrb[0].mxu0
        %v1567 = vadd.f32 %v1406, %v1566
        %1568 = vmatprep.mubr.f32.mxu0 0.0
        %1569 = vmatmul.mubr.f32.gmra.mrb[0].mxu0 %v1272
        %v1570 = vpop.f32.mrb[0].mxu0
        %v1571 = vadd.f32 %v1410, %v1570
        %v1572 = vpop.f32.mrb[0].mxu0
        %v1573 = vadd.f32 %v1412, %v1572
        %1574 = vmatprep.mubr.f32.mxu0 0.0
        %1575 = vmatmul.mubr.f32.gmra.mrb[0].mxu0 %v1275
        %v1576 = vpop.f32.mrb[0].mxu0
        %v1577 = vadd.f32 %v1416, %v1576
        %v1578 = vpop.f32.mrb[0].mxu0
        %v1579 = vadd.f32 %v1418, %v1578
        %1580 = vmatprep.mubr.f32.mxu0 0.0
        %1581 = vmatmul.mubr.f32.gmra.mrb[0].mxu0 %v1278
        %v1582 = vpop.f32.mrb[0].mxu0
        %v1583 = vadd.f32 %v1422, %v1582
        %v1584 = vpop.f32.mrb[0].mxu0
        %v1585 = vadd.f32 %v1424, %v1584
        %1586 = vmatprep.mubr.f32.mxu0 0.0
        %1587 = vmatmul.mubr.f32.gmra.mrb[0].mxu0 %v1281
        %v1588 = vpop.f32.mrb[0].mxu0
        %v1589 = vadd.f32 %v1428, %v1588
        %v1590 = vpop.f32.mrb[0].mxu0
        %v1591 = vadd.f32 %v1430, %v1590
        %1592 = vmatprep.mubr.f32.mxu0 0.0
        %1593 = vmatmul.mubr.f32.gmra.mrb[0].mxu0 %v1284
        %v1594 = vpop.f32.mrb[0].mxu0
        %v1595 = vadd.f32 %v1434, %v1594
        %v1596 = vpop.f32.mrb[0].mxu0
        %v1597 = vadd.f32 %v1436, %v1596
        %1598 = vmatprep.mubr.f32.mxu0 0.0
        %1599 = vmatmul.mubr.f32.gmra.mrb[0].mxu0 %v1287
        %v1600 = vpop.f32.mrb[0].mxu0
        %v1601 = vadd.f32 %v1440, %v1600
        %v1602 = vpop.f32.mrb[0].mxu0
        %v1603 = vadd.f32 %v1442, %v1602
        %1604 = vmatprep.mubr.f32.mxu0 0.0
        %1605 = vmatmul.mubr.f32.gmra.mrb[0].mxu0 %v1290
        %v1606 = vpop.f32.mrb[0].mxu0
        %v1607 = vadd.f32 %v1446, %v1606
        %v1608 = vpop.f32.mrb[0].mxu0
        %v1609 = vadd.f32 %v1448, %v1608
        %1610 = vmatprep.mubr.f32.mxu0 0.0
        %1611 = vmatmul.mubr.f32.gmra.mrb[0].mxu0 %v1293
        %v1612 = vpop.f32.mrb[0].mxu0
        %v1613 = vadd.f32 %v1452, %v1612
        %v1614 = vpop.f32.mrb[0].mxu0
        %v1615 = vadd.f32 %v1454, %v1614
        %1616 = vdwg.mxu0
        %v1617 = vld [vmem:[%s327] sm:$0xff]
        %v1618 = vld [vmem:[%s327 + $0x8] sm:$0xff]
        %v1619 = vld [vmem:[%s327 + $0x10] sm:$0xff]
        %v1620 = vld [vmem:[%s327 + $0x18] sm:$0xff]
        %v1621 = vld [vmem:[%s327 + $0x20] sm:$0xff]
        %v1622 = vld [vmem:[%s327 + $0x28] sm:$0xff]
        %v1623 = vld [vmem:[%s327 + $0x30] sm:$0xff]
        %v1624 = vld [vmem:[%s327 + $0x38] sm:$0xff]
        %v1625 = vxor.u32 %v1547, 2147483648
        %v1626 = vxor.u32 %v1549, 2147483648
        %v1627 = vxor.u32 %v1553, 2147483648
        %v1628 = vxor.u32 %v1555, 2147483648
        %v1629 = vxor.u32 %v1559, 2147483648
        %v1630 = vxor.u32 %v1561, 2147483648
        %v1631 = vxor.u32 %v1565, 2147483648
        %v1632 = vxor.u32 %v1567, 2147483648
        %v1633 = vmul.f32 %v1625, 1.442695
        %v1634 = vpow.pop %v1633
        %v1635 = vmul.f32 %v1626, 1.442695
        %v1636 = vpow.pop %v1635
        %v1637 = vmul.f32 %v1627, 1.442695
        %v1638 = vpow.pop %v1637
        %v1639 = vmul.f32 %v1628, 1.442695
        %v1640 = vpow.pop %v1639
        %v1641 = vmul.f32 %v1629, 1.442695
        %v1642 = vpow.pop %v1641
        %v1643 = vmul.f32 %v1630, 1.442695
        %v1644 = vpow.pop %v1643
        %v1645 = vmul.f32 %v1631, 1.442695
        %v1646 = vpow.pop %v1645
        %v1647 = vmul.f32 %v1632, 1.442695
        %v1648 = vpow.pop %v1647
        %v1649 = vadd.f32 %v1634, 1.0
        %v1650 = vadd.f32 %v1636, 1.0
        %v1651 = vadd.f32 %v1638, 1.0
        %v1652 = vadd.f32 %v1640, 1.0
        %v1653 = vadd.f32 %v1642, 1.0
        %v1654 = vadd.f32 %v1644, 1.0
        %v1655 = vadd.f32 %v1646, 1.0
        %v1656 = vadd.f32 %v1648, 1.0
        %v1657 = vrcp.pop %v1649
        %v1658 = vmul.f32 1.0, %v1657
        %v1659 = vrcp.pop %v1650
        %v1660 = vmul.f32 1.0, %v1659
        %v1661 = vrcp.pop %v1651
        %v1662 = vmul.f32 1.0, %v1661
        %v1663 = vrcp.pop %v1652
        %v1664 = vmul.f32 1.0, %v1663
        %v1665 = vrcp.pop %v1653
        %v1666 = vmul.f32 1.0, %v1665
        %v1667 = vrcp.pop %v1654
        %v1668 = vmul.f32 1.0, %v1667
        %v1669 = vrcp.pop %v1655
        %v1670 = vmul.f32 1.0, %v1669
        %v1671 = vrcp.pop %v1656
        %v1672 = vmul.f32 1.0, %v1671
        %v1673 = vmul.f32 %v1658, %v1617
        %v1674 = vmul.f32 %v1660, %v1618
        %v1675 = vmul.f32 %v1662, %v1619
        %v1676 = vmul.f32 %v1664, %v1620
        %v1677 = vmul.f32 %v1666, %v1621
        %v1678 = vmul.f32 %v1668, %v1622
        %v1679 = vmul.f32 %v1670, %v1623
        %v1680 = vmul.f32 %v1672, %v1624
        %v1681 = vxor.u32 %v1523, 2147483648
        %v1682 = vxor.u32 %v1525, 2147483648
        %v1683 = vxor.u32 %v1529, 2147483648
        %v1684 = vxor.u32 %v1531, 2147483648
        %v1685 = vxor.u32 %v1535, 2147483648
        %v1686 = vxor.u32 %v1537, 2147483648
        %v1687 = vxor.u32 %v1541, 2147483648
        %v1688 = vxor.u32 %v1543, 2147483648
        %v1689 = vmul.f32 %v1681, 1.442695
        %v1690 = vpow.pop %v1689
        %v1691 = vmul.f32 %v1682, 1.442695
        %v1692 = vpow.pop %v1691
        %v1693 = vmul.f32 %v1683, 1.442695
        %v1694 = vpow.pop %v1693
        %v1695 = vmul.f32 %v1684, 1.442695
        %v1696 = vpow.pop %v1695
        %v1697 = vmul.f32 %v1685, 1.442695
        %v1698 = vpow.pop %v1697
        %v1699 = vmul.f32 %v1686, 1.442695
        %v1700 = vpow.pop %v1699
        %v1701 = vmul.f32 %v1687, 1.442695
        %v1702 = vpow.pop %v1701
        %v1703 = vmul.f32 %v1688, 1.442695
        %v1704 = vpow.pop %v1703
        %v1705 = vadd.f32 %v1690, 1.0
        %v1706 = vadd.f32 %v1692, 1.0
        %v1707 = vadd.f32 %v1694, 1.0
        %v1708 = vadd.f32 %v1696, 1.0
        %v1709 = vadd.f32 %v1698, 1.0
        %v1710 = vadd.f32 %v1700, 1.0
        %v1711 = vadd.f32 %v1702, 1.0
        %v1712 = vadd.f32 %v1704, 1.0
        %v1713 = vrcp.pop %v1705
        %v1714 = vmul.f32 1.0, %v1713
        %v1715 = vrcp.pop %v1706
        %v1716 = vmul.f32 1.0, %v1715
        %v1717 = vrcp.pop %v1707
        %v1718 = vmul.f32 1.0, %v1717
        %v1719 = vrcp.pop %v1708
        %v1720 = vmul.f32 1.0, %v1719
        %v1721 = vrcp.pop %v1709
        %v1722 = vmul.f32 1.0, %v1721
        %v1723 = vrcp.pop %v1710
        %v1724 = vmul.f32 1.0, %v1723
        %v1725 = vrcp.pop %v1711
        %v1726 = vmul.f32 1.0, %v1725
        %v1727 = vrcp.pop %v1712
        %v1728 = vmul.f32 1.0, %v1727
        %v1729 = vtanh.pop %v1595
        %v1730 = vtanh.pop %v1597
        %v1731 = vtanh.pop %v1601
        %v1732 = vtanh.pop %v1603
        %v1733 = vtanh.pop %v1607
        %v1734 = vtanh.pop %v1609
        %v1735 = vtanh.pop %v1613
        %v1736 = vtanh.pop %v1615
        %v1737 = vmul.f32 %v1714, %v1729
        %v1738 = vmul.f32 %v1716, %v1730
        %v1739 = vmul.f32 %v1718, %v1731
        %v1740 = vmul.f32 %v1720, %v1732
        %v1741 = vmul.f32 %v1722, %v1733
        %v1742 = vmul.f32 %v1724, %v1734
        %v1743 = vmul.f32 %v1726, %v1735
        %v1744 = vmul.f32 %v1728, %v1736
        %v1745 = vadd.f32 %v1673, %v1737
        %v1746 = vadd.f32 %v1674, %v1738
        %v1747 = vadd.f32 %v1675, %v1739
        %v1748 = vadd.f32 %v1676, %v1740
        %v1749 = vadd.f32 %v1677, %v1741
        %v1750 = vadd.f32 %v1678, %v1742
        %v1751 = vadd.f32 %v1679, %v1743
        %v1752 = vadd.f32 %v1680, %v1744
        %1753 = vst [vmem:[%s312] sm:$0xff] %v1745
        %1754 = vst [vmem:[%s312 + $0x8] sm:$0xff] %v1746
        %1755 = vst [vmem:[%s312 + $0x10] sm:$0xff] %v1747
        %1756 = vst [vmem:[%s312 + $0x18] sm:$0xff] %v1748
        %1757 = vst [vmem:[%s312 + $0x20] sm:$0xff] %v1749
        %1758 = vst [vmem:[%s312 + $0x28] sm:$0xff] %v1750
        %1759 = vst [vmem:[%s312 + $0x30] sm:$0xff] %v1751
        %1760 = vst [vmem:[%s312 + $0x38] sm:$0xff] %v1752
        %v1761 = vxor.u32 %v1571, 2147483648
        %v1762 = vxor.u32 %v1573, 2147483648
        %v1763 = vxor.u32 %v1577, 2147483648
        %v1764 = vxor.u32 %v1579, 2147483648
        %v1765 = vxor.u32 %v1583, 2147483648
        %v1766 = vxor.u32 %v1585, 2147483648
        %v1767 = vxor.u32 %v1589, 2147483648
        %v1768 = vxor.u32 %v1591, 2147483648
        %v1769 = vmul.f32 %v1761, 1.442695
        %v1770 = vpow.pop %v1769
        %v1771 = vmul.f32 %v1762, 1.442695
        %v1772 = vpow.pop %v1771
        %v1773 = vmul.f32 %v1763, 1.442695
        %v1774 = vpow.pop %v1773
        %v1775 = vmul.f32 %v1764, 1.442695
        %v1776 = vpow.pop %v1775
        %v1777 = vmul.f32 %v1765, 1.442695
        %v1778 = vpow.pop %v1777
        %v1779 = vmul.f32 %v1766, 1.442695
        %v1780 = vpow.pop %v1779
        %v1781 = vmul.f32 %v1767, 1.442695
        %v1782 = vpow.pop %v1781
        %v1783 = vmul.f32 %v1768, 1.442695
        %v1784 = vpow.pop %v1783
        %v1785 = vadd.f32 %v1770, 1.0
        %v1786 = vadd.f32 %v1772, 1.0
        %v1787 = vadd.f32 %v1774, 1.0
        %v1788 = vadd.f32 %v1776, 1.0
        %v1789 = vadd.f32 %v1778, 1.0
        %v1790 = vadd.f32 %v1780, 1.0
        %v1791 = vadd.f32 %v1782, 1.0
        %v1792 = vadd.f32 %v1784, 1.0
        %v1793 = vrcp.pop %v1785
        %v1794 = vmul.f32 1.0, %v1793
        %v1795 = vrcp.pop %v1786
        %v1796 = vmul.f32 1.0, %v1795
        %v1797 = vrcp.pop %v1787
        %v1798 = vmul.f32 1.0, %v1797
        %v1799 = vrcp.pop %v1788
        %v1800 = vmul.f32 1.0, %v1799
        %v1801 = vrcp.pop %v1789
        %v1802 = vmul.f32 1.0, %v1801
        %v1803 = vrcp.pop %v1790
        %v1804 = vmul.f32 1.0, %v1803
        %v1805 = vrcp.pop %v1791
        %v1806 = vmul.f32 1.0, %v1805
        %v1807 = vrcp.pop %v1792
        %v1808 = vmul.f32 1.0, %v1807
        %v1809 = vtanh.pop %v1745
        %v1810 = vtanh.pop %v1746
        %v1811 = vtanh.pop %v1747
        %v1812 = vtanh.pop %v1748
        %v1813 = vtanh.pop %v1749
        %v1814 = vtanh.pop %v1750
        %v1815 = vtanh.pop %v1751
        %v1816 = vtanh.pop %v1752
        %v1817 = vmul.f32 %v1794, %v1809
        %v1818 = vmul.f32 %v1796, %v1810
        %v1819 = vmul.f32 %v1798, %v1811
        %v1820 = vmul.f32 %v1800, %v1812
        %v1821 = vmul.f32 %v1802, %v1813
        %v1822 = vmul.f32 %v1804, %v1814
        %v1823 = vmul.f32 %v1806, %v1815
        %v1824 = vmul.f32 %v1808, %v1816
        %1825 = vst [vmem:[%s305] sm:$0xff] %v1817
        %1826 = vst [vmem:[%s305 + $0x8] sm:$0xff] %v1818
        %1827 = vst [vmem:[%s305 + $0x10] sm:$0xff] %v1819
        %1828 = vst [vmem:[%s305 + $0x18] sm:$0xff] %v1820
        %1829 = vst [vmem:[%s305 + $0x20] sm:$0xff] %v1821
        %1830 = vst [vmem:[%s305 + $0x28] sm:$0xff] %v1822
        %1831 = vst [vmem:[%s305 + $0x30] sm:$0xff] %v1823
        %1832 = vst [vmem:[%s305 + $0x38] sm:$0xff] %v1824
        %s1833 = sand.u32 %s174, 1
        %s1834 = scalar_lea.sflag [#allocation4], %s1833
        %s1835 = sand.u32 %s174, 1
        %s1836 = smul.addr %s1835, 64
        %s1837 = scalar_lea.vmem [#allocation3], %s1836
        %s1838 = sand.u32 %s200, 1
        %s1839 = scalar_lea.sflag [#allocation6], %s1838
        %s1840 = sand.u32 %s200, 1
        %s1841 = smul.addr %s1840, 64
        %s1842 = scalar_lea.vmem [#allocation5], %s1841
        // Predicated region
        $region45: #{tpu_custom_call.1} parent=43 // pred_check
          %p1843 = pneg %p184
        $region46: #{tpu_custom_call.1} parent=43 // pred_check_branch
          %1845 = sbr.rel (%p1843) target = $region48
        $region47: #{tpu_custom_call.1} parent=43 // pred_region
          %s1847 = ssub.s32 1024, 1024
          %1848 = vsyncadd %s1834, %s1847
          %s1849 = smul.addr %s25, 8
          %s1850 = smul.addr %s1849, 128
          %s1851 = scalar_lea.hbm %s6, %s1850
          %s1852 = sshll.u32 %s1837, 4
          %s1853 = int_to_ptr.vmem [resolvable:$true] %s1852
          %1858 = dma.vmem_to_hbm [thread:$0]  %s1853, 1024, %s1851, %s1834, 256, 256, 16
        $region48: #{tpu_custom_call.1} parent=43 // pred_fallthru
          _
        // Predicated region
        $region49: #{tpu_custom_call.1} parent=43 // pred_check
          %p1859 = pneg %p210
        $region50: #{tpu_custom_call.1} parent=43 // pred_check_branch
          %1861 = sbr.rel (%p1859) target = $region52
        $region51: #{tpu_custom_call.1} parent=43 // pred_region
          %s1863 = ssub.s32 1024, 1024
          %1864 = vsyncadd %s1839, %s1863
          %s1865 = smul.addr %s25, 8
          %s1866 = smul.addr %s1865, 128
          %s1867 = scalar_lea.hbm %s7, %s1866
          %s1868 = sshll.u32 %s1842, 4
          %s1869 = int_to_ptr.vmem [resolvable:$true] %s1868
          %1874 = dma.vmem_to_hbm [thread:$0]  %s1869, 1024, %s1867, %s1839, 256, 256, 16
        $region52: #{tpu_custom_call.1} parent=43 // pred_fallthru
          _
      $region44: #{tpu_custom_call.1} parent=5 // pred_fallthru
        _
      %p1875 = scmp.le.s32.totalorder 2, %s20
      // Predicated region
      $region53: #{tpu_custom_call.1} parent=5 // pred_check
        %p1876 = pneg %p1875
      $region54: #{tpu_custom_call.1} parent=5 // pred_check_branch
        %1878 = sbr.rel (%p1876) target = $region56
      $region55: #{tpu_custom_call.1} parent=5 // pred_region
        %s1879 = ssub.s32 %s20, 2
        // Predicated region
        $region57: #{tpu_custom_call.1} parent=55 // pred_check
          %p1880 = pneg %p190
        $region58: #{tpu_custom_call.1} parent=55 // pred_check_branch
          %1882 = sbr.rel (%p1880) target = $region60
        $region59: #{tpu_custom_call.1} parent=55 // pred_region
          %s1883 = sand.u32 %s175, 1
          %s1884 = scalar_lea.sflag [#allocation4], %s1883
          %s1885 = sand.u32 %s175, 1
          %s1886 = smul.addr %s1885, 64
          %s1887 = scalar_lea.vmem [#allocation3], %s1886
          %1888 = dma.done %s1884, 1024
        $region60: #{tpu_custom_call.1} parent=55 // pred_fallthru
          _
        // Predicated region
        $region61: #{tpu_custom_call.1} parent=55 // pred_check
          %p1889 = pneg %p216
        $region62: #{tpu_custom_call.1} parent=55 // pred_check_branch
          %1891 = sbr.rel (%p1889) target = $region64
        $region63: #{tpu_custom_call.1} parent=55 // pred_region
          %s1892 = sand.u32 %s201, 1
          %s1893 = scalar_lea.sflag [#allocation6], %s1892
          %s1894 = sand.u32 %s201, 1
          %s1895 = smul.addr %s1894, 64
          %s1896 = scalar_lea.vmem [#allocation5], %s1895
          %1897 = dma.done %s1893, 1024
        $region64: #{tpu_custom_call.1} parent=55 // pred_fallthru
          _
      $region56: #{tpu_custom_call.1} parent=5 // pred_fallthru
        _
    $region6: #{tpu_custom_call.1} parent=1 // loop_footer
      %s24 = sadd.s32 1, %s20
    $region7: #{tpu_custom_call.1} parent=1 // loop_footer_branch
      %19 = sbr.rel target = $region3
    $region8: #{tpu_custom_call.1} parent=1 // loop_exit
      _
    %1898 = vsyncpa [#allocation4], 1
    %s1899 = scalar_lea.sflag [#allocation4], 1
    %1900 = vsyncpa %s1899, 1
    %1901 = vsyncpa [#allocation6], 1
    %s1902 = scalar_lea.sflag [#allocation6], 1
    %1903 = vsyncpa %s1902, 1

</llo_original>
